<compile_context>
chip_gen: v6e
topology: v6e:2x2x1
jax: 0.10.0
libtpu: 0.0.40
codegen_flags: <defaults>
</compile_context>

<pallas_src>
import functools

import jax
import jax.numpy as jnp
import numpy as np
from jax.experimental import pallas as pl
from jax.experimental.pallas import tpu as pltpu

LEAK = 0.1
EPS = 1e-3  # BatchNorm eps from the module


# ----------------------------------------------------------------------------
# Pallas kernel.
#   grid = (2, n_row_tiles):  axis 0 = pass (0: stats, 1: normalize+store),
#                             axis 1 = row tile over M = B*H*W.
# ----------------------------------------------------------------------------
def _inception_kernel(x_ref, mask_ref, wc_ref, wm_ref, gamma_ref, beta_ref,
                      out_ref, stats_ref, *, cin, minv):
    p = pl.program_id(0)   # 0: accumulate BN stats, 1: normalize + store
    i = pl.program_id(1)   # row-tile index

    x = x_ref[...]                                        # (TM, KPAD) bf16

    # Branches 0/1/2 (1x1, 3x3, 5x5 convs): ONE wide MXU dot against the
    # packed (KPAD, CPAD) weight (f32 accumulation).
    y = jnp.dot(x, wc_ref[...], preferred_element_type=jnp.float32)

    # Branch 3: 3x3 max-pool rebuilt from the centre 3x3 column groups of the
    # 5x5 im2col.  The additive border mask (0 for valid taps, -1e30 for
    # out-of-bounds taps) reproduces PyTorch's -inf max-pool padding; the
    # centre tap is always valid, so mp stays finite.  Then a small 1x1 dot.
    mask = mask_ref[...]                                  # (TM, 9) f32
    mp = None
    k = 0
    for ky in (1, 2, 3):
        for kx in (1, 2, 3):
            g = ky * 5 + kx                               # 5x5 im2col group
            slab = x[:, g * cin:(g + 1) * cin].astype(jnp.float32) \
                + mask[:, k:k + 1]
            mp = slab if mp is None else jnp.maximum(mp, slab)
            k += 1
    y = y + jnp.dot(mp.astype(x.dtype), wm_ref[...],
                    preferred_element_type=jnp.float32)   # (TM, CPAD)

    # ---- pass 0: global BatchNorm statistics (sum, sum of squares) ----
    @pl.when(jnp.logical_and(p == 0, i == 0))
    def _():
        stats_ref[...] = jnp.zeros_like(stats_ref)

    @pl.when(p == 0)
    def _():
        stats_ref[0:1, :] += jnp.sum(y, axis=0, keepdims=True)
        stats_ref[1:2, :] += jnp.sum(y * y, axis=0, keepdims=True)

    # ---- pass 1: normalize with batch stats, LeakyReLU, lane-dense store ----
    @pl.when(p == 1)
    def _():
        mean = stats_ref[0:1, :] * minv                   # (1, CPAD)
        var = stats_ref[1:2, :] * minv - mean * mean      # biased variance
        z = (y - mean) * jax.lax.rsqrt(var + EPS) * gamma_ref[...] \
            + beta_ref[...]
        out_ref[...] = jnp.where(z > 0.0, z, LEAK * z)    # LeakyReLU(0.1)


# ----------------------------------------------------------------------------
# Wrapper: layout glue (NCHW<->rows, im2col, weight packing) in plain JAX.
# ----------------------------------------------------------------------------
def _round_up(n, m):
    return ((n + m - 1) // m) * m


@functools.partial(jax.jit, static_argnames=("tile_m",))
def inception_block(x_nchw, params, *, tile_m=1024):
    w1, w3, w5, wm = params["w1"], params["w3"], params["w5"], params["wm"]
    gamma, beta = params["gamma"], params["beta"]

    B, Cin, H, W = x_nchw.shape
    F = w1.shape[-1]
    M = B * H * W
    KU = 25 * Cin                       # packed contraction width (5x5 im2col)
    KPAD = _round_up(KU, 128)           # pad K once, lane-aligned
    CPAD = _round_up(4 * F, 128)        # lane-dense output channels

    tile_m = min(_round_up(tile_m, 8), _round_up(M, 8))
    m_pad = _round_up(M, tile_m)
    n_tiles = m_pad // tile_m

    # ---- activations: ONE zero-padded 5x5 im2col, bf16, K packed once ----
    # TODO(synk): the remaining 25x im2col replication could be removed by
    # passing the halo-padded NHWC tensor and building the shifted views
    # in-kernel (pl.ds / pltpu.roll); kept as wrapper layout glue here.
    x = jnp.transpose(x_nchw, (0, 2, 3, 1)).astype(jnp.float32)       # NHWC
    xp = jnp.pad(x, ((0, 0), (2, 2), (2, 2), (0, 0)))
    cols = [xp[:, ky:ky + H, kx:kx + W, :]
            for ky in range(5) for kx in range(5)]
    p5 = jnp.concatenate(cols, axis=-1).reshape(M, KU).astype(jnp.bfloat16)
    # Zero row-padding keeps the BN sums exact (padded rows produce y == 0).
    x_packed = jnp.pad(p5, ((0, m_pad - M), (0, KPAD - KU)))

    # ---- border-validity mask for the in-kernel 3x3 max-pool ----
    hs, ws = jnp.arange(H), jnp.arange(W)
    mcols = []
    for dy in (-1, 0, 1):
        for dx in (-1, 0, 1):
            ok = ((hs + dy >= 0) & (hs + dy < H))[:, None] & \
                 ((ws + dx >= 0) & (ws + dx < W))[None, :]
            mcols.append(jnp.where(ok, 0.0, -1e30).astype(jnp.float32))
    mask_hw = jnp.stack(mcols, axis=-1)                                # (H,W,9)
    mask = jnp.broadcast_to(mask_hw[None], (B, H, W, 9)).reshape(M, 9)
    mask = jnp.pad(mask, ((0, m_pad - M), (0, 0)))   # padded rows: all "valid"

    # ---- weights: embed 1x1/3x3 into the 5x5 im2col layout, one (K,4F) slab --
    w1e = jnp.zeros((5, 5, Cin, F), jnp.float32).at[2, 2].set(w1)
    w3e = jnp.zeros((5, 5, Cin, F), jnp.float32).at[1:4, 1:4].set(w3)
    wc = jnp.concatenate([w1e.reshape(KU, F), w3e.reshape(KU, F),
                          w5.reshape(KU, F),
                          jnp.zeros((KU, F), jnp.float32)], axis=1)    # (KU,4F)
    wc_p = (jnp.zeros((KPAD, CPAD), jnp.float32)
            .at[:KU, :4 * F].set(wc).astype(jnp.bfloat16))
    wm_p = (jnp.zeros((Cin, CPAD), jnp.float32)
            .at[:, 3 * F:4 * F].set(wm).astype(jnp.bfloat16))

    gamma_p = jnp.zeros((1, CPAD), jnp.float32).at[0, :4 * F].set(gamma.reshape(-1))
    beta_p = jnp.zeros((1, CPAD), jnp.float32).at[0, :4 * F].set(beta.reshape(-1))

    kernel = functools.partial(_inception_kernel, cin=Cin, minv=1.0 / M)

    out = pl.pallas_call(
        kernel,
        out_shape=jax.ShapeDtypeStruct((m_pad, CPAD), jnp.float32),
        grid=(2, n_tiles),
        in_specs=[
            pl.BlockSpec((tile_m, KPAD), lambda p, i: (i, 0)),   # im2col rows
            pl.BlockSpec((tile_m, 9), lambda p, i: (i, 0)),      # pool mask
            pl.BlockSpec((KPAD, CPAD), lambda p, i: (0, 0)),     # packed conv W
            pl.BlockSpec((Cin, CPAD), lambda p, i: (0, 0)),      # maxpool 1x1 W
            pl.BlockSpec((1, CPAD), lambda p, i: (0, 0)),        # gamma (packed)
            pl.BlockSpec((1, CPAD), lambda p, i: (0, 0)),        # beta  (packed)
        ],
        # Pass 0 never writes the output: keep its block index pinned at 0 so
        # no stale writeback happens; pass 1 sweeps the tiles (i*p == i).
        out_specs=pl.BlockSpec((tile_m, CPAD), lambda p, i: (i * p, 0)),
        scratch_shapes=[pltpu.VMEM((2, CPAD), jnp.float32)],     # [sum; sumsq]
        compiler_params=pltpu.CompilerParams(
            # Both axes sequential: the BN-stat scratch is a cross-tile
            # accumulator read back in pass 1 (cannot be split across cores).
            dimension_semantics=("arbitrary", "arbitrary")),
    )(x_packed, mask, wc_p, wm_p, gamma_p, beta_p)

    out = out[:M, :4 * F].reshape(B, H, W, 4 * F)
    return jnp.transpose(out, (0, 3, 1, 2))                      # back to NCHW


# ----------------------------------------------------------------------------
# Pure-JAX reference (lax conv / reduce_window) for correctness checking.
# ----------------------------------------------------------------------------
def inception_block_ref(x, params):
    w1, w3, w5, wm = params["w1"], params["w3"], params["w5"], params["wm"]
    gamma, beta = params["gamma"], params["beta"]
    Cin = x.shape[1]
    F = w1.shape[-1]

    def conv(xx, w_hwio, pad):
        return jax.lax.conv_general_dilated(
            xx, w_hwio, (1, 1), [(pad, pad), (pad, pad)],
            dimension_numbers=("NCHW", "HWIO", "NCHW"))

    def bn_lrelu(y, g, b):
        mean = jnp.mean(y, axis=(0, 2, 3), keepdims=True)
        var = jnp.mean(jnp.square(y - mean), axis=(0, 2, 3), keepdims=True)
        z = (y - mean) * jax.lax.rsqrt(var + EPS) \
            * g[None, :, None, None] + b[None, :, None, None]
        return jnp.where(z > 0, z, LEAK * z)

    x0 = bn_lrelu(conv(x, w1.reshape(1, 1, Cin, F), 0), gamma[0], beta[0])
    x1 = bn_lrelu(conv(x, w3, 1), gamma[1], beta[1])
    x2 = bn_lrelu(conv(x, w5, 2), gamma[2], beta[2])
    mp = jax.lax.reduce_window(x, -jnp.inf, jax.lax.max,
                               (1, 1, 3, 3), (1, 1, 1, 1),
                               [(0, 0), (0, 0), (1, 1), (1, 1)])
    x3 = bn_lrelu(conv(mp, wm.reshape(1, 1, Cin, F), 0), gamma[3], beta[3])
    return jnp.concatenate([x0, x1, x2, x3], axis=1)


if __name__ == "__main__":
    B, Cin, H, W, F = 2, 4, 16, 16, 8

    key = jax.random.PRNGKey(0)
    ks = jax.random.split(key, 7)
    # Conv weights stored in HWIO == PyTorch weight.permute(2, 3, 1, 0).
    params = {
        "w1": jax.random.normal(ks[0], (Cin, F), jnp.float32) * 0.2,
        "w3": jax.random.normal(ks[1], (3, 3, Cin, F), jnp.float32) * 0.1,
        "w5": jax.random.normal(ks[2], (5, 5, Cin, F), jnp.float32) * 0.05,
        "wm": jax.random.normal(ks[3], (Cin, F), jnp.float32) * 0.2,
        "gamma": 1.0 + 0.1 * jax.random.normal(ks[4], (4, F), jnp.float32),
        "beta": 0.1 * jax.random.normal(ks[5], (4, F), jnp.float32),
    }
    x = jax.random.normal(ks[6], (B, Cin, H, W), jnp.float32)

    # tile_m=128 -> M=512 rows split into 4 pipelined tiles (exercises the
    # tiled grid and the cross-tile BatchNorm statistics).
    out = inception_block(x, params, tile_m=128)
    out = jax.block_until_ready(out)
    assert out.shape == (B, 4 * F, H, W), out.shape

    ref = inception_block_ref(x, params)
    # bf16 matmul operands (f32 accumulation / BN) => a few 1e-3 of error.
    np.testing.assert_allclose(np.asarray(out), np.asarray(ref),
                               rtol=2e-2, atol=2e-2)
    print("KERNEL_OK")
</pallas_src>

<mosaic_0001>
module attributes {stable_mosaic.version = 11 : i64} {
  func.func @_inception_kernel(%arg0: i32, %arg1: i32, %arg2: memref<128x128xbf16, #tpu.memory_space<vmem>>, %arg3: memref<128x9xf32, #tpu.memory_space<vmem>>, %arg4: memref<128x128xbf16, #tpu.memory_space<vmem>>, %arg5: memref<4x128xbf16, #tpu.memory_space<vmem>>, %arg6: memref<1x128xf32, #tpu.memory_space<vmem>>, %arg7: memref<1x128xf32, #tpu.memory_space<vmem>>, %arg8: memref<128x128xf32, #tpu.memory_space<vmem>>, %arg9: memref<2x128xf32, #tpu.memory_space<vmem>>) attributes {dimension_semantics = [#tpu.dimension_semantics<arbitrary>, #tpu.dimension_semantics<arbitrary>], iteration_bounds = array<i64: 2, 4>, scalar_prefetch = 0 : i64, scratch_operands = 1 : i64, tpu.core_type = #tpu.core_type<tc>, window_params = [{transform_indices = @transform_0, window_bounds = array<i64: 128, 128>}, {transform_indices = @transform_1, window_bounds = array<i64: 128, 9>}, {pipeline_mode = #tpu.pipeline_mode<synchronous>, transform_indices = @transform_2, window_bounds = array<i64: 128, 128>}, {pipeline_mode = #tpu.pipeline_mode<synchronous>, transform_indices = @transform_3, window_bounds = array<i64: 4, 128>}, {pipeline_mode = #tpu.pipeline_mode<synchronous>, transform_indices = @transform_4, window_bounds = array<i64: 1, 128>}, {pipeline_mode = #tpu.pipeline_mode<synchronous>, transform_indices = @transform_5, window_bounds = array<i64: 1, 128>}, {transform_indices = @transform_6, window_bounds = array<i64: 128, 128>}]} {
    %c0 = arith.constant 0 : index
    %c0_0 = arith.constant 0 : index
    %0 = vector.load %arg2[%c0, %c0_0] : memref<128x128xbf16, #tpu.memory_space<vmem>>, vector<128x128xbf16>
    %c0_1 = arith.constant 0 : index
    %c0_2 = arith.constant 0 : index
    %1 = vector.load %arg4[%c0_1, %c0_2] : memref<128x128xbf16, #tpu.memory_space<vmem>>, vector<128x128xbf16>
    %cst = arith.constant dense<0.000000e+00> : vector<128x128xf32>
    %2 = tpu.matmul %0, %1, %cst {dimension_numbers = #tpu.dot_dimension_numbers<[1], [0], [0], [1], [0, 0, 1, 1], [], []>} : vector<128x128xbf16>, vector<128x128xbf16>, vector<128x128xf32> -> vector<128x128xf32>
    %c0_3 = arith.constant 0 : index
    %c0_4 = arith.constant 0 : index
    %3 = vector.load %arg3[%c0_3, %c0_4] : memref<128x9xf32, #tpu.memory_space<vmem>>, vector<128x9xf32>
    %4 = vector.extract_strided_slice %0 {offsets = [0, 24], sizes = [128, 4], strides = [1, 1]} : vector<128x128xbf16> to vector<128x4xbf16>
    %5 = arith.extf %4 : vector<128x4xbf16> to vector<128x4xf32>
    %6 = vector.extract_strided_slice %3 {offsets = [0, 0], sizes = [128, 1], strides = [1, 1]} : vector<128x9xf32> to vector<128x1xf32>
    %7 = vector.broadcast %6 : vector<128x1xf32> to vector<128x4xf32>
    %8 = arith.addf %5, %7 : vector<128x4xf32>
    %9 = vector.extract_strided_slice %0 {offsets = [0, 28], sizes = [128, 4], strides = [1, 1]} : vector<128x128xbf16> to vector<128x4xbf16>
    %10 = arith.extf %9 : vector<128x4xbf16> to vector<128x4xf32>
    %11 = vector.extract_strided_slice %3 {offsets = [0, 1], sizes = [128, 1], strides = [1, 1]} : vector<128x9xf32> to vector<128x1xf32>
    %12 = vector.broadcast %11 : vector<128x1xf32> to vector<128x4xf32>
    %13 = arith.addf %10, %12 : vector<128x4xf32>
    %14 = arith.maximumf %8, %13 : vector<128x4xf32>
    %15 = vector.extract_strided_slice %0 {offsets = [0, 32], sizes = [128, 4], strides = [1, 1]} : vector<128x128xbf16> to vector<128x4xbf16>
    %16 = arith.extf %15 : vector<128x4xbf16> to vector<128x4xf32>
    %17 = vector.extract_strided_slice %3 {offsets = [0, 2], sizes = [128, 1], strides = [1, 1]} : vector<128x9xf32> to vector<128x1xf32>
    %18 = vector.broadcast %17 : vector<128x1xf32> to vector<128x4xf32>
    %19 = arith.addf %16, %18 : vector<128x4xf32>
    %20 = arith.maximumf %14, %19 : vector<128x4xf32>
    %21 = vector.extract_strided_slice %0 {offsets = [0, 44], sizes = [128, 4], strides = [1, 1]} : vector<128x128xbf16> to vector<128x4xbf16>
    %22 = arith.extf %21 : vector<128x4xbf16> to vector<128x4xf32>
    %23 = vector.extract_strided_slice %3 {offsets = [0, 3], sizes = [128, 1], strides = [1, 1]} : vector<128x9xf32> to vector<128x1xf32>
    %24 = vector.broadcast %23 : vector<128x1xf32> to vector<128x4xf32>
    %25 = arith.addf %22, %24 : vector<128x4xf32>
    %26 = arith.maximumf %20, %25 : vector<128x4xf32>
    %27 = vector.extract_strided_slice %0 {offsets = [0, 48], sizes = [128, 4], strides = [1, 1]} : vector<128x128xbf16> to vector<128x4xbf16>
    %28 = arith.extf %27 : vector<128x4xbf16> to vector<128x4xf32>
    %29 = vector.extract_strided_slice %3 {offsets = [0, 4], sizes = [128, 1], strides = [1, 1]} : vector<128x9xf32> to vector<128x1xf32>
    %30 = vector.broadcast %29 : vector<128x1xf32> to vector<128x4xf32>
    %31 = arith.addf %28, %30 : vector<128x4xf32>
    %32 = arith.maximumf %26, %31 : vector<128x4xf32>
    %33 = vector.extract_strided_slice %0 {offsets = [0, 52], sizes = [128, 4], strides = [1, 1]} : vector<128x128xbf16> to vector<128x4xbf16>
    %34 = arith.extf %33 : vector<128x4xbf16> to vector<128x4xf32>
    %35 = vector.extract_strided_slice %3 {offsets = [0, 5], sizes = [128, 1], strides = [1, 1]} : vector<128x9xf32> to vector<128x1xf32>
    %36 = vector.broadcast %35 : vector<128x1xf32> to vector<128x4xf32>
    %37 = arith.addf %34, %36 : vector<128x4xf32>
    %38 = arith.maximumf %32, %37 : vector<128x4xf32>
    %39 = vector.extract_strided_slice %0 {offsets = [0, 64], sizes = [128, 4], strides = [1, 1]} : vector<128x128xbf16> to vector<128x4xbf16>
    %40 = arith.extf %39 : vector<128x4xbf16> to vector<128x4xf32>
    %41 = vector.extract_strided_slice %3 {offsets = [0, 6], sizes = [128, 1], strides = [1, 1]} : vector<128x9xf32> to vector<128x1xf32>
    %42 = vector.broadcast %41 : vector<128x1xf32> to vector<128x4xf32>
    %43 = arith.addf %40, %42 : vector<128x4xf32>
    %44 = arith.maximumf %38, %43 : vector<128x4xf32>
    %45 = vector.extract_strided_slice %0 {offsets = [0, 68], sizes = [128, 4], strides = [1, 1]} : vector<128x128xbf16> to vector<128x4xbf16>
    %46 = arith.extf %45 : vector<128x4xbf16> to vector<128x4xf32>
    %47 = vector.extract_strided_slice %3 {offsets = [0, 7], sizes = [128, 1], strides = [1, 1]} : vector<128x9xf32> to vector<128x1xf32>
    %48 = vector.broadcast %47 : vector<128x1xf32> to vector<128x4xf32>
    %49 = arith.addf %46, %48 : vector<128x4xf32>
    %50 = arith.maximumf %44, %49 : vector<128x4xf32>
    %51 = vector.extract_strided_slice %0 {offsets = [0, 72], sizes = [128, 4], strides = [1, 1]} : vector<128x128xbf16> to vector<128x4xbf16>
    %52 = arith.extf %51 : vector<128x4xbf16> to vector<128x4xf32>
    %53 = vector.extract_strided_slice %3 {offsets = [0, 8], sizes = [128, 1], strides = [1, 1]} : vector<128x9xf32> to vector<128x1xf32>
    %54 = vector.broadcast %53 : vector<128x1xf32> to vector<128x4xf32>
    %55 = arith.addf %52, %54 : vector<128x4xf32>
    %56 = arith.maximumf %50, %55 : vector<128x4xf32>
    %57 = arith.truncf %56 : vector<128x4xf32> to vector<128x4xbf16>
    %c0_5 = arith.constant 0 : index
    %c0_6 = arith.constant 0 : index
    %58 = vector.load %arg5[%c0_5, %c0_6] : memref<4x128xbf16, #tpu.memory_space<vmem>>, vector<4x128xbf16>
    %cst_7 = arith.constant dense<0.000000e+00> : vector<128x128xf32>
    %59 = tpu.matmul %57, %58, %cst_7 {dimension_numbers = #tpu.dot_dimension_numbers<[1], [0], [0], [1], [0, 0, 1, 1], [], []>} : vector<128x4xbf16>, vector<4x128xbf16>, vector<128x128xf32> -> vector<128x128xf32>
    %60 = arith.addf %2, %59 : vector<128x128xf32>
    %c0_i32 = arith.constant 0 : i32
    %61 = arith.cmpi eq, %arg0, %c0_i32 : i32
    %c0_i32_8 = arith.constant 0 : i32
    %62 = arith.cmpi eq, %arg1, %c0_i32_8 : i32
    %63 = arith.andi %61, %62 : i1
    %64 = arith.extui %63 : i1 to i32
    %c0_i32_9 = arith.constant 0 : i32
    %65 = arith.cmpi ne, %64, %c0_i32_9 : i32
    scf.if %65 {
      %cst_13 = arith.constant 0.000000e+00 : f32
      %72 = vector.broadcast %cst_13 : f32 to vector<2x128xf32>
      %c0_14 = arith.constant 0 : index
      %c0_15 = arith.constant 0 : index
      %73 = vector.load %arg9[%c0_14, %c0_15] : memref<2x128xf32, #tpu.memory_space<vmem>>, vector<2x128xf32>
      tpu.vector_store %arg9[%c0_14, %c0_15], %72 {strides = array<i32>} : memref<2x128xf32, #tpu.memory_space<vmem>>, vector<2x128xf32>,
    } else {
    }
    %c0_i32_10 = arith.constant 0 : i32
    %66 = arith.cmpi eq, %arg0, %c0_i32_10 : i32
    %67 = arith.extui %66 : i1 to i32
    %c0_i32_11 = arith.constant 0 : i32
    %68 = arith.cmpi ne, %67, %c0_i32_11 : i32
    scf.if %68 {
      %c0_13 = arith.constant 0 : index
      %c0_14 = arith.constant 0 : index
      %72 = vector.load %arg9[%c0_13, %c0_14] : memref<2x128xf32, #tpu.memory_space<vmem>>, vector<1x128xf32>
      %cst_15 = arith.constant dense<0.000000e+00> : vector<128xf32>
      %73 = vector.multi_reduction <add>, %60, %cst_15 [0] : vector<128x128xf32> to vector<128xf32>
      %74 = vector.shape_cast %73 : vector<128xf32> to vector<1x128xf32>
      %75 = arith.addf %72, %74 : vector<1x128xf32>
      %c0_16 = arith.constant 0 : index
      %c0_17 = arith.constant 0 : index
      %76 = vector.load %arg9[%c0_16, %c0_17] : memref<2x128xf32, #tpu.memory_space<vmem>>, vector<1x128xf32>
      tpu.vector_store %arg9[%c0_16, %c0_17], %75 {strides = array<i32>} : memref<2x128xf32, #tpu.memory_space<vmem>>, vector<1x128xf32>,
      %c1 = arith.constant 1 : index
      %c0_18 = arith.constant 0 : index
      %77 = vector.load %arg9[%c1, %c0_18] : memref<2x128xf32, #tpu.memory_space<vmem>>, vector<1x128xf32>
      %78 = arith.mulf %60, %60 : vector<128x128xf32>
      %cst_19 = arith.constant dense<0.000000e+00> : vector<128xf32>
      %79 = vector.multi_reduction <add>, %78, %cst_19 [0] : vector<128x128xf32> to vector<128xf32>
      %80 = vector.shape_cast %79 : vector<128xf32> to vector<1x128xf32>
      %81 = arith.addf %77, %80 : vector<1x128xf32>
      %c1_20 = arith.constant 1 : index
      %c0_21 = arith.constant 0 : index
      %82 = vector.load %arg9[%c1_20, %c0_21] : memref<2x128xf32, #tpu.memory_space<vmem>>, vector<1x128xf32>
      tpu.vector_store %arg9[%c1_20, %c0_21], %81 {strides = array<i32>} : memref<2x128xf32, #tpu.memory_space<vmem>>, vector<1x128xf32>,
    } else {
    }
    %c1_i32 = arith.constant 1 : i32
    %69 = arith.cmpi eq, %arg0, %c1_i32 : i32
    %70 = arith.extui %69 : i1 to i32
    %c0_i32_12 = arith.constant 0 : i32
    %71 = arith.cmpi ne, %70, %c0_i32_12 : i32
    scf.if %71 {
      %c0_13 = arith.constant 0 : index
      %c0_14 = arith.constant 0 : index
      %72 = vector.load %arg9[%c0_13, %c0_14] : memref<2x128xf32, #tpu.memory_space<vmem>>, vector<1x128xf32>
      %cst_15 = arith.constant 0.001953125 : f32
      %73 = vector.broadcast %cst_15 : f32 to vector<1x128xf32>
      %74 = arith.mulf %72, %73 : vector<1x128xf32>
      %c1 = arith.constant 1 : index
      %c0_16 = arith.constant 0 : index
      %75 = vector.load %arg9[%c1, %c0_16] : memref<2x128xf32, #tpu.memory_space<vmem>>, vector<1x128xf32>
      %cst_17 = arith.constant 0.001953125 : f32
      %76 = vector.broadcast %cst_17 : f32 to vector<1x128xf32>
      %77 = arith.mulf %75, %76 : vector<1x128xf32>
      %78 = arith.mulf %74, %74 : vector<1x128xf32>
      %79 = arith.subf %77, %78 : vector<1x128xf32>
      %80 = vector.broadcast %74 : vector<1x128xf32> to vector<128x128xf32>
      %81 = arith.subf %60, %80 : vector<128x128xf32>
      %cst_18 = arith.constant 1.000000e-03 : f32
      %82 = vector.broadcast %cst_18 : f32 to vector<1x128xf32>
      %83 = arith.addf %79, %82 : vector<1x128xf32>
      %84 = math.rsqrt %83 : vector<1x128xf32>
      %85 = vector.broadcast %84 : vector<1x128xf32> to vector<128x128xf32>
      %86 = arith.mulf %81, %85 : vector<128x128xf32>
      %c0_19 = arith.constant 0 : index
      %c0_20 = arith.constant 0 : index
      %87 = vector.load %arg6[%c0_19, %c0_20] : memref<1x128xf32, #tpu.memory_space<vmem>>, vector<1x128xf32>
      %88 = vector.broadcast %87 : vector<1x128xf32> to vector<128x128xf32>
      %89 = arith.mulf %86, %88 : vector<128x128xf32>
      %c0_21 = arith.constant 0 : index
      %c0_22 = arith.constant 0 : index
      %90 = vector.load %arg7[%c0_21, %c0_22] : memref<1x128xf32, #tpu.memory_space<vmem>>, vector<1x128xf32>
      %91 = vector.broadcast %90 : vector<1x128xf32> to vector<128x128xf32>
      %92 = arith.addf %89, %91 : vector<128x128xf32>
      %cst_23 = arith.constant 0.000000e+00 : f32
      %93 = vector.broadcast %cst_23 : f32 to vector<128x128xf32>
      %94 = arith.cmpf ogt, %92, %93 : vector<128x128xf32>
      %cst_24 = arith.constant 1.000000e-01 : f32
      %95 = vector.broadcast %cst_24 : f32 to vector<128x128xf32>
      %96 = arith.mulf %95, %92 : vector<128x128xf32>
      %97 = arith.select %94, %92, %96 : vector<128x128xi1>, vector<128x128xf32>
      %c0_25 = arith.constant 0 : index
      %c0_26 = arith.constant 0 : index
      %98 = vector.load %arg8[%c0_25, %c0_26] : memref<128x128xf32, #tpu.memory_space<vmem>>, vector<128x128xf32>
      tpu.vector_store %arg8[%c0_25, %c0_26], %97 {strides = array<i32>} : memref<128x128xf32, #tpu.memory_space<vmem>>, vector<128x128xf32>,
    } else {
    }
    return
  }
  func.func @transform_0(%arg0: i32, %arg1: i32) -> (i32, i32) {
    %c0_i32 = arith.constant 0 : i32
    %c0_i32_0 = arith.constant 0 : i32
    return %arg1, %c0_i32 : i32, i32
  }
  func.func @transform_1(%arg0: i32, %arg1: i32) -> (i32, i32) {
    %c0_i32 = arith.constant 0 : i32
    %c0_i32_0 = arith.constant 0 : i32
    return %arg1, %c0_i32 : i32, i32
  }
  func.func @transform_2(%arg0: i32, %arg1: i32) -> (i32, i32) {
    %c0_i32 = arith.constant 0 : i32
    %c0_i32_0 = arith.constant 0 : i32
    %c0_i32_1 = arith.constant 0 : i32
    return %c0_i32, %c0_i32_0 : i32, i32
  }
  func.func @transform_3(%arg0: i32, %arg1: i32) -> (i32, i32) {
    %c0_i32 = arith.constant 0 : i32
    %c0_i32_0 = arith.constant 0 : i32
    %c0_i32_1 = arith.constant 0 : i32
    return %c0_i32, %c0_i32_0 : i32, i32
  }
  func.func @transform_4(%arg0: i32, %arg1: i32) -> (i32, i32) {
    %c0_i32 = arith.constant 0 : i32
    %c0_i32_0 = arith.constant 0 : i32
    %c0_i32_1 = arith.constant 0 : i32
    return %c0_i32, %c0_i32_0 : i32, i32
  }
  func.func @transform_5(%arg0: i32, %arg1: i32) -> (i32, i32) {
    %c0_i32 = arith.constant 0 : i32
    %c0_i32_0 = arith.constant 0 : i32
    %c0_i32_1 = arith.constant 0 : i32
    return %c0_i32, %c0_i32_0 : i32, i32
  }
  func.func @transform_6(%arg0: i32, %arg1: i32) -> (i32, i32) {
    %0 = arith.muli %arg1, %arg0 : i32
    %c0_i32 = arith.constant 0 : i32
    %c0_i32_0 = arith.constant 0 : i32
    return %0, %c0_i32 : i32, i32
  }
}

</mosaic_0001>

<llo_original>
// kernel: inception_block.1
$region0: #{inception_block.1}
  #allocation0 [shape = 'u32[]', space=smem, size = 0x4, offset = 0x4, fixed_abs, tag = 'smem constant byte address 0x4 - core index']
  #allocation1 [shape = 'u32[144,128]{1,0:T(1,128)}', space=vmem, size = 0x12000, scoped, tag = 'internal scratch']
  #allocation2 [shape = 'f32[2,128]{1,0:T(2,128)}', space=vmem, size = 0x400, scoped, tag = 'scratch operand']
  %s0 = inlined_call_operand.vmem [shape: bf16[512,128], index: 0, kind: input, shape index: {}]
  %s1 = inlined_call_operand.vmem [shape: f32[512,9], index: 1, kind: input, shape index: {}]
  %s2 = inlined_call_operand.vmem [shape: bf16[128,128], index: 2, kind: input, shape index: {}]
  %s3 = inlined_call_operand.vmem [shape: bf16[4,128], index: 3, kind: input, shape index: {}]
  %s4 = inlined_call_operand.vmem [shape: f32[1,128], index: 4, kind: input, shape index: {}]
  %s5 = inlined_call_operand.vmem [shape: f32[1,128], index: 5, kind: input, shape index: {}]
  %s6 = inlined_call_operand.hbm [shape: f32[512,128], index: 6, kind: output, shape index: {}]
  %s7 = sld [smem:[#allocation0]]
  $region69: #{inception_block.1} parent=0
    _
  %s9 = ssub.s32 1, %s7
  %s10 = scalar_select 0, %s9, %s7
  $region1: #{inception_block.1} parent=0
    #allocation3 [shape = 'u8[131072]{0}', space=vmem, size = 0x20000, scoped, tag = 'output window, operand 0']
    #allocation4 [shape = 's32[2]{0}', space=sflag, size = 0x8, scoped, tag = 'scoped memory for inception_block.1']
    %11 = vsyncpa [#allocation4], 0
    %s12 = scalar_lea.sflag [#allocation4], 1
    %13 = vsyncpa %s12, 0
    loop: start=0, step=1, limit=10
    $region2: #{inception_block.1} parent=1 // loop_pre_header
      _
    $region3: #{inception_block.1} parent=1 // loop_header
      %s15 = sphi 0, %s19
      %p16 = scmp.ge.s32.totalorder %s15, 10
      %s22 = sphi 0, %s34
      %s23 = sphi 0, %s30
      %s24 = sphi 0, %s22
      %s25 = sphi 0, %s23
      %s26 = sphi 0, %s24
      %s27 = sphi 0, %s25
      %s37 = sphi 0, %s39
      %s40 = sphi 0, %s37
      %s41 = sphi 0, %s40
      %s57 = sphi 0, %s41
      %s63 = sphi 0, %s65
      %s66 = sphi 0, %s63
      %s67 = sphi 0, %s66
      %s83 = sphi 0, %s67
      %s87 = sphi 0, %s87
      %s89 = sphi 0, %s87
      %s90 = sphi 0, %s89
      %s104 = sphi 0, %s90
      %s108 = sphi 0, %s108
      %s110 = sphi 0, %s108
      %s111 = sphi 0, %s110
      %s125 = sphi 0, %s111
      %s129 = sphi 0, %s129
      %s131 = sphi 0, %s129
      %s132 = sphi 0, %s131
      %s146 = sphi 0, %s132
      %s150 = sphi 0, %s150
      %s152 = sphi 0, %s150
      %s153 = sphi 0, %s152
      %s167 = sphi 0, %s153
      %s175 = sphi 0, %s177
      %s178 = sphi 0, %s175
      %s179 = sphi 0, %s178
      %s195 = sphi 0, %s179
    $region4: #{inception_block.1} parent=1 // loop_header_branch
      %18 = sbr.rel (%p16) target = $region8
    $region5: #{inception_block.1} parent=1 // loop_body
      %s20 = ssub.s32 %s15, 1
      %s21 = ssub.s32 %s15, 2
      %s28 = sadd.s32 1, %s23
      %p29 = scmp.ge.s32.totalorder %s28, 4
      %s30 = scalar_select %p29, 0, %s28
      %s31 = sadd.s32 1, %s22
      %s32 = scalar_select %p29, %s31, %s22
      %p33 = scmp.ge.s32.totalorder %s32, 2
      %s34 = scalar_select %p33, 0, %s32
      %s35 = ssub.s32 %s23, %s30
      %p36 = scmp.eq.s32.totalorder %s35, 0
      %s38 = sadd.s32 %s37, 1
      %s39 = scalar_select %p36, %s37, %s38
      %p42 = pneg %p36
      %p43 = scmp.eq.s32.totalorder %s15, 7
      %p44 = por %p42, %p43
      %p45 = scmp.ne.s32.totalorder %s37, %s40
      %p46 = scmp.eq.s32.totalorder %s15, 0
      %p47 = por %p45, %p46
      %p48 = scmp.ne.s32.totalorder %s37, %s40
      %p49 = scmp.eq.s32.totalorder %s20, 7
      %p50 = por %p48, %p49
      %p51 = scmp.ne.s32.totalorder %s40, %s41
      %p52 = scmp.eq.s32.totalorder %s20, 0
      %p53 = por %p51, %p52
      %p54 = scmp.ne.s32.totalorder %s40, %s41
      %p55 = scmp.eq.s32.totalorder %s21, 7
      %p56 = por %p54, %p55
      %p58 = scmp.ne.s32.totalorder %s41, %s57
      %p59 = scmp.eq.s32.totalorder %s21, 0
      %p60 = por %p58, %p59
      %s61 = ssub.s32 %s23, %s30
      %p62 = scmp.eq.s32.totalorder %s61, 0
      %s64 = sadd.s32 %s63, 1
      %s65 = scalar_select %p62, %s63, %s64
      %p68 = pneg %p62
      %p69 = scmp.eq.s32.totalorder %s15, 7
      %p70 = por %p68, %p69
      %p71 = scmp.ne.s32.totalorder %s63, %s66
      %p72 = scmp.eq.s32.totalorder %s15, 0
      %p73 = por %p71, %p72
      %p74 = scmp.ne.s32.totalorder %s63, %s66
      %p75 = scmp.eq.s32.totalorder %s20, 7
      %p76 = por %p74, %p75
      %p77 = scmp.ne.s32.totalorder %s66, %s67
      %p78 = scmp.eq.s32.totalorder %s20, 0
      %p79 = por %p77, %p78
      %p80 = scmp.ne.s32.totalorder %s66, %s67
      %p81 = scmp.eq.s32.totalorder %s21, 7
      %p82 = por %p80, %p81
      %p84 = scmp.ne.s32.totalorder %s67, %s83
      %p85 = scmp.eq.s32.totalorder %s21, 0
      %p86 = por %p84, %p85
      %s88 = sadd.s32 %s87, 1
      %p91 = scmp.eq.s32.totalorder %s15, 7
      %p92 = scmp.ne.s32.totalorder %s87, %s89
      %p93 = scmp.eq.s32.totalorder %s15, 0
      %p94 = por %p92, %p93
      %p95 = scmp.ne.s32.totalorder %s87, %s89
      %p96 = scmp.eq.s32.totalorder %s20, 7
      %p97 = por %p95, %p96
      %p98 = scmp.ne.s32.totalorder %s89, %s90
      %p99 = scmp.eq.s32.totalorder %s20, 0
      %p100 = por %p98, %p99
      %p101 = scmp.ne.s32.totalorder %s89, %s90
      %p102 = scmp.eq.s32.totalorder %s21, 7
      %p103 = por %p101, %p102
      %p105 = scmp.ne.s32.totalorder %s90, %s104
      %p106 = scmp.eq.s32.totalorder %s21, 0
      %p107 = por %p105, %p106
      %s109 = sadd.s32 %s108, 1
      %p112 = scmp.eq.s32.totalorder %s15, 7
      %p113 = scmp.ne.s32.totalorder %s108, %s110
      %p114 = scmp.eq.s32.totalorder %s15, 0
      %p115 = por %p113, %p114
      %p116 = scmp.ne.s32.totalorder %s108, %s110
      %p117 = scmp.eq.s32.totalorder %s20, 7
      %p118 = por %p116, %p117
      %p119 = scmp.ne.s32.totalorder %s110, %s111
      %p120 = scmp.eq.s32.totalorder %s20, 0
      %p121 = por %p119, %p120
      %p122 = scmp.ne.s32.totalorder %s110, %s111
      %p123 = scmp.eq.s32.totalorder %s21, 7
      %p124 = por %p122, %p123
      %p126 = scmp.ne.s32.totalorder %s111, %s125
      %p127 = scmp.eq.s32.totalorder %s21, 0
      %p128 = por %p126, %p127
      %s130 = sadd.s32 %s129, 1
      %p133 = scmp.eq.s32.totalorder %s15, 7
      %p134 = scmp.ne.s32.totalorder %s129, %s131
      %p135 = scmp.eq.s32.totalorder %s15, 0
      %p136 = por %p134, %p135
      %p137 = scmp.ne.s32.totalorder %s129, %s131
      %p138 = scmp.eq.s32.totalorder %s20, 7
      %p139 = por %p137, %p138
      %p140 = scmp.ne.s32.totalorder %s131, %s132
      %p141 = scmp.eq.s32.totalorder %s20, 0
      %p142 = por %p140, %p141
      %p143 = scmp.ne.s32.totalorder %s131, %s132
      %p144 = scmp.eq.s32.totalorder %s21, 7
      %p145 = por %p143, %p144
      %p147 = scmp.ne.s32.totalorder %s132, %s146
      %p148 = scmp.eq.s32.totalorder %s21, 0
      %p149 = por %p147, %p148
      %s151 = sadd.s32 %s150, 1
      %p154 = scmp.eq.s32.totalorder %s15, 7
      %p155 = scmp.ne.s32.totalorder %s150, %s152
      %p156 = scmp.eq.s32.totalorder %s15, 0
      %p157 = por %p155, %p156
      %p158 = scmp.ne.s32.totalorder %s150, %s152
      %p159 = scmp.eq.s32.totalorder %s20, 7
      %p160 = por %p158, %p159
      %p161 = scmp.ne.s32.totalorder %s152, %s153
      %p162 = scmp.eq.s32.totalorder %s20, 0
      %p163 = por %p161, %p162
      %p164 = scmp.ne.s32.totalorder %s152, %s153
      %p165 = scmp.eq.s32.totalorder %s21, 7
      %p166 = por %p164, %p165
      %p168 = scmp.ne.s32.totalorder %s153, %s167
      %p169 = scmp.eq.s32.totalorder %s21, 0
      %p170 = por %p168, %p169
      %s171 = smul.u32 %s23, %s22
      %s172 = smul.u32 %s30, %s34
      %s173 = ssub.s32 %s171, %s172
      %p174 = scmp.eq.s32.totalorder %s173, 0
      %s176 = sadd.s32 %s175, 1
      %s177 = scalar_select %p174, %s175, %s176
      %p180 = pneg %p174
      %p181 = scmp.eq.s32.totalorder %s15, 7
      %p182 = por %p180, %p181
      %p183 = scmp.ne.s32.totalorder %s175, %s178
      %p184 = scmp.eq.s32.totalorder %s15, 0
      %p185 = por %p183, %p184
      %p186 = scmp.ne.s32.totalorder %s175, %s178
      %p187 = scmp.eq.s32.totalorder %s20, 7
      %p188 = por %p186, %p187
      %p189 = scmp.ne.s32.totalorder %s178, %s179
      %p190 = scmp.eq.s32.totalorder %s20, 0
      %p191 = por %p189, %p190
      %p192 = scmp.ne.s32.totalorder %s178, %s179
      %p193 = scmp.eq.s32.totalorder %s21, 7
      %p194 = por %p192, %p193
      %p196 = scmp.ne.s32.totalorder %s179, %s195
      %p197 = scmp.eq.s32.totalorder %s21, 0
      %p198 = por %p196, %p197
      %p199 = scmp.le.s32.totalorder 1, %s15
      %p200 = scmp.lt.s32.totalorder %s15, 9
      %p201 = pnand %p199, %p200
      %p202 = pneg %p201
      // Predicated region
      $region9: #{inception_block.1} parent=5 // pred_check
        _
      $region10: #{inception_block.1} parent=5 // pred_check_branch
        %204 = sbr.rel (%p201) target = $region12
      $region11: #{inception_block.1} parent=5 // pred_region
        %s205 = ssub.s32 %s15, 1
        // Predicated region
        $region13: #{inception_block.1} parent=11 // pred_check
          %p206 = pneg %p100
        $region14: #{inception_block.1} parent=11 // pred_check_branch
          %208 = sbr.rel (%p206) target = $region16
        $region15: #{inception_block.1} parent=11 // pred_region
          _
        $region16: #{inception_block.1} parent=11 // pred_fallthru
          _
        // Predicated region
        $region17: #{inception_block.1} parent=11 // pred_check
          %p209 = pneg %p121
        $region18: #{inception_block.1} parent=11 // pred_check_branch
          %211 = sbr.rel (%p209) target = $region20
        $region19: #{inception_block.1} parent=11 // pred_region
          _
        $region20: #{inception_block.1} parent=11 // pred_fallthru
          _
        // Predicated region
        $region21: #{inception_block.1} parent=11 // pred_check
          %p212 = pneg %p142
        $region22: #{inception_block.1} parent=11 // pred_check_branch
          %214 = sbr.rel (%p212) target = $region24
        $region23: #{inception_block.1} parent=11 // pred_region
          _
        $region24: #{inception_block.1} parent=11 // pred_fallthru
          _
        // Predicated region
        $region25: #{inception_block.1} parent=11 // pred_check
          %p215 = pneg %p163
        $region26: #{inception_block.1} parent=11 // pred_check_branch
          %217 = sbr.rel (%p215) target = $region28
        $region27: #{inception_block.1} parent=11 // pred_region
          _
        $region28: #{inception_block.1} parent=11 // pred_fallthru
          _
      $region12: #{inception_block.1} parent=5 // pred_fallthru
        _
      %p218 = scmp.lt.s32.totalorder %s15, 8
      // Predicated region
      $region29: #{inception_block.1} parent=5 // pred_check
        %p219 = pneg %p218
      $region30: #{inception_block.1} parent=5 // pred_check_branch
        %221 = sbr.rel (%p219) target = $region32
      $region31: #{inception_block.1} parent=5 // pred_region
        // Predicated region
        $region33: #{inception_block.1} parent=31 // pred_check
          %p222 = pneg %p47
        $region34: #{inception_block.1} parent=31 // pred_check_branch
          %224 = sbr.rel (%p222) target = $region36
        $region35: #{inception_block.1} parent=31 // pred_region
          %s225 = smul.u32 16, %s23
          %p226 = scmp.lt.s32.totalorder %s225, 63
          %s227 = scalar_select %p226, %s225, 63
          %s228 = smul.addr %s227, 4
          %s229 = scalar_lea.vmem %s0, %s228
          %s230 = smul.u32 16, %s23
        $region36: #{inception_block.1} parent=31 // pred_fallthru
          _
        // Predicated region
        $region37: #{inception_block.1} parent=31 // pred_check
          %p231 = pneg %p73
        $region38: #{inception_block.1} parent=31 // pred_check_branch
          %233 = sbr.rel (%p231) target = $region40
        $region39: #{inception_block.1} parent=31 // pred_region
          %s234 = smul.u32 16, %s23
          %p235 = scmp.lt.s32.totalorder %s234, 63
          %s236 = scalar_select %p235, %s234, 63
          %s237 = smul.addr %s236, 8
          %s238 = scalar_lea.vmem %s1, %s237
          %s239 = smul.u32 16, %s23
        $region40: #{inception_block.1} parent=31 // pred_fallthru
          _
      $region32: #{inception_block.1} parent=5 // pred_fallthru
        _
      %p240 = scmp.le.s32.totalorder 1, %s15
      %p241 = scmp.lt.s32.totalorder %s15, 9
      %p242 = pnand %p240, %p241
      %p243 = pneg %p242
      // Predicated region
      $region41: #{inception_block.1} parent=5 // pred_check
        _
      $region42: #{inception_block.1} parent=5 // pred_check_branch
        %245 = sbr.rel (%p242) target = $region44
      $region43: #{inception_block.1} parent=5 // pred_region
        %s246 = ssub.s32 %s15, 1
        %s247 = smul.u32 16, %s25
        %p248 = scmp.lt.s32.totalorder %s247, 63
        %s249 = scalar_select %p248, %s247, 63
        %s250 = smul.addr %s249, 4
        %s251 = scalar_lea.vmem %s0, %s250
        %p252 = pneg %p53
        %p253 = pneg %p50
        %s254 = smul.u32 16, %s25
        %p255 = scmp.lt.s32.totalorder %s254, 63
        %s256 = scalar_select %p255, %s254, 63
        %s257 = smul.addr %s256, 8
        %s258 = scalar_lea.vmem %s1, %s257
        %p259 = pneg %p79
        %p260 = pneg %p76
        %p261 = pneg %p100
        %p262 = pneg %p97
        %p263 = pneg %p121
        %p264 = pneg %p118
        %p265 = pneg %p142
        %p266 = pneg %p139
        %p267 = pneg %p163
        %p268 = pneg %p160
        %p269 = pneg %p191
        %p270 = pneg %p188
        %s271 = sand.u32 %s178, 1
        %s272 = scalar_lea.sflag [#allocation4], %s271
        %s273 = sand.u32 %s178, 1
        %s274 = smul.addr %s273, 128
        %s275 = scalar_lea.vmem [#allocation3], %s274
        %s276 = smul.u32 16, %s25
        %p277 = scmp.lt.s32.totalorder %s276, 63
        %s278 = scalar_select %p277, %s276, 63
        %s279 = smul.addr %s278, 4
        %s280 = scalar_lea.vmem %s0, %s279
        %s281 = smul.u32 16, %s25
        %s282 = smul.u32 16, %s25
        %p283 = scmp.lt.s32.totalorder %s282, 63
        %s284 = scalar_select %p283, %s282, 63
        %s285 = smul.addr %s284, 8
        %s286 = scalar_lea.vmem %s1, %s285
        %s287 = smul.u32 16, %s25
        %s288 = smul.u32 %s25, %s24
        %s289 = smul.u32 16, %s288
        %v291 = vld [vmem:[%s280] sm:$0xf]
        %v292 = vld [vmem:[%s280 + $0x4] sm:$0xf]
        %v293 = vld [vmem:[%s280 + $0x8] sm:$0xf]
        %v294 = vld [vmem:[%s280 + $0xc] sm:$0xf]
        %v295 = vld [vmem:[%s280 + $0x10] sm:$0xf]
        %v296 = vld [vmem:[%s280 + $0x14] sm:$0xf]
        %v297 = vld [vmem:[%s280 + $0x18] sm:$0xf]
        %v298 = vld [vmem:[%s280 + $0x1c] sm:$0xf]
        %v299 = vld [vmem:[%s280 + $0x20] sm:$0xf]
        %v300 = vld [vmem:[%s280 + $0x24] sm:$0xf]
        %v301 = vld [vmem:[%s280 + $0x28] sm:$0xf]
        %v302 = vld [vmem:[%s280 + $0x2c] sm:$0xf]
        %v303 = vld [vmem:[%s280 + $0x30] sm:$0xf]
        %v304 = vld [vmem:[%s280 + $0x34] sm:$0xf]
        %v305 = vld [vmem:[%s280 + $0x38] sm:$0xf]
        %v306 = vld [vmem:[%s280 + $0x3c] sm:$0xf]
        %v307 = vld [vmem:[%s2] sm:$0xf]
        %v308 = vld [vmem:[%s2 + $0x4] sm:$0xf]
        %v309 = vld [vmem:[%s2 + $0x8] sm:$0xf]
        %v310 = vld [vmem:[%s2 + $0xc] sm:$0xf]
        %v311 = vld [vmem:[%s2 + $0x10] sm:$0xf]
        %v312 = vld [vmem:[%s2 + $0x14] sm:$0xf]
        %v313 = vld [vmem:[%s2 + $0x18] sm:$0xf]
        %v314 = vld [vmem:[%s2 + $0x1c] sm:$0xf]
        %v315 = vld [vmem:[%s2 + $0x20] sm:$0xf]
        %v316 = vld [vmem:[%s2 + $0x24] sm:$0xf]
        %v317 = vld [vmem:[%s2 + $0x28] sm:$0xf]
        %v318 = vld [vmem:[%s2 + $0x2c] sm:$0xf]
        %v319 = vld [vmem:[%s2 + $0x30] sm:$0xf]
        %v320 = vld [vmem:[%s2 + $0x34] sm:$0xf]
        %v321 = vld [vmem:[%s2 + $0x38] sm:$0xf]
        %v322 = vld [vmem:[%s2 + $0x3c] sm:$0xf]
        %v323 = vld [vmem:[%s286] sm:$0xff]
        %v324 = vld [vmem:[%s286 + $0x8] sm:$0xff]
        %v325 = vld [vmem:[%s286 + $0x10] sm:$0xff]
        %v326 = vld [vmem:[%s286 + $0x18] sm:$0xff]
        %v327 = vld [vmem:[%s286 + $0x20] sm:$0xff]
        %v328 = vld [vmem:[%s286 + $0x28] sm:$0xff]
        %v329 = vld [vmem:[%s286 + $0x30] sm:$0xff]
        %v330 = vld [vmem:[%s286 + $0x38] sm:$0xff]
        %v331 = vld [vmem:[%s286 + $0x40] sm:$0xff]
        %v332 = vld [vmem:[%s286 + $0x48] sm:$0xff]
        %v333 = vld [vmem:[%s286 + $0x50] sm:$0xff]
        %v334 = vld [vmem:[%s286 + $0x58] sm:$0xff]
        %v335 = vld [vmem:[%s286 + $0x60] sm:$0xff]
        %v336 = vld [vmem:[%s286 + $0x68] sm:$0xff]
        %v337 = vld [vmem:[%s286 + $0x70] sm:$0xff]
        %v338 = vld [vmem:[%s286 + $0x78] sm:$0xff]
        %v339 = vunpack.c.l.bf16 %v291
        %v340 = vunpack.c.l.bf16 %v292
        %v341 = vunpack.c.l.bf16 %v293
        %v342 = vunpack.c.l.bf16 %v294
        %v343 = vunpack.c.l.bf16 %v295
        %v344 = vunpack.c.l.bf16 %v296
        %v345 = vunpack.c.l.bf16 %v297
        %v346 = vunpack.c.l.bf16 %v298
        %v347 = vunpack.c.l.bf16 %v299
        %v348 = vunpack.c.l.bf16 %v300
        %v349 = vunpack.c.l.bf16 %v301
        %v350 = vunpack.c.l.bf16 %v302
        %v351 = vunpack.c.l.bf16 %v303
        %v352 = vunpack.c.l.bf16 %v304
        %v353 = vunpack.c.l.bf16 %v305
        %v354 = vunpack.c.l.bf16 %v306
        %356 = vset.pattern.permute.xlu0 0
        %357 = vperm.xlu0 %356, %v323
        %v358 = vpop.permute.xlu0 %357
        %361 = vset.pattern.permute.xlu0 0
        %362 = vperm.xlu0 %361, %v324
        %v363 = vpop.permute.xlu0 %362
        %366 = vset.pattern.permute.xlu0 0
        %367 = vperm.xlu0 %366, %v325
        %v368 = vpop.permute.xlu0 %367
        %371 = vset.pattern.permute.xlu0 0
        %372 = vperm.xlu0 %371, %v326
        %v373 = vpop.permute.xlu0 %372
        %376 = vset.pattern.permute.xlu0 0
        %377 = vperm.xlu0 %376, %v327
        %v378 = vpop.permute.xlu0 %377
        %381 = vset.pattern.permute.xlu0 0
        %382 = vperm.xlu0 %381, %v328
        %v383 = vpop.permute.xlu0 %382
        %386 = vset.pattern.permute.xlu0 0
        %387 = vperm.xlu0 %386, %v329
        %v388 = vpop.permute.xlu0 %387
        %391 = vset.pattern.permute.xlu0 0
        %392 = vperm.xlu0 %391, %v330
        %v393 = vpop.permute.xlu0 %392
        %396 = vset.pattern.permute.xlu0 0
        %397 = vperm.xlu0 %396, %v331
        %v398 = vpop.permute.xlu0 %397
        %401 = vset.pattern.permute.xlu0 0
        %402 = vperm.xlu0 %401, %v332
        %v403 = vpop.permute.xlu0 %402
        %406 = vset.pattern.permute.xlu0 0
        %407 = vperm.xlu0 %406, %v333
        %v408 = vpop.permute.xlu0 %407
        %411 = vset.pattern.permute.xlu0 0
        %412 = vperm.xlu0 %411, %v334
        %v413 = vpop.permute.xlu0 %412
        %416 = vset.pattern.permute.xlu0 0
        %417 = vperm.xlu0 %416, %v335
        %v418 = vpop.permute.xlu0 %417
        %421 = vset.pattern.permute.xlu0 0
        %422 = vperm.xlu0 %421, %v336
        %v423 = vpop.permute.xlu0 %422
        %426 = vset.pattern.permute.xlu0 0
        %427 = vperm.xlu0 %426, %v337
        %v428 = vpop.permute.xlu0 %427
        %431 = vset.pattern.permute.xlu0 0
        %432 = vperm.xlu0 %431, %v338
        %v433 = vpop.permute.xlu0 %432
        %v435 = vadd.f32 %v339, %v358
        %v436 = vadd.f32 %v340, %v363
        %v437 = vadd.f32 %v341, %v368
        %v438 = vadd.f32 %v342, %v373
        %v439 = vadd.f32 %v343, %v378
        %v440 = vadd.f32 %v344, %v383
        %v441 = vadd.f32 %v345, %v388
        %v442 = vadd.f32 %v346, %v393
        %v443 = vadd.f32 %v347, %v398
        %v444 = vadd.f32 %v348, %v403
        %v445 = vadd.f32 %v349, %v408
        %v446 = vadd.f32 %v350, %v413
        %v447 = vadd.f32 %v351, %v418
        %v448 = vadd.f32 %v352, %v423
        %v449 = vadd.f32 %v353, %v428
        %v450 = vadd.f32 %v354, %v433
        %451 = vset.pattern.permute.xlu0 1
        %452 = vperm.xlu0 %451, %v323
        %v453 = vpop.permute.xlu0 %452
        %455 = vset.pattern.permute.xlu0 1
        %456 = vperm.xlu0 %455, %v324
        %v457 = vpop.permute.xlu0 %456
        %459 = vset.pattern.permute.xlu0 1
        %460 = vperm.xlu0 %459, %v325
        %v461 = vpop.permute.xlu0 %460
        %463 = vset.pattern.permute.xlu0 1
        %464 = vperm.xlu0 %463, %v326
        %v465 = vpop.permute.xlu0 %464
        %467 = vset.pattern.permute.xlu0 1
        %468 = vperm.xlu0 %467, %v327
        %v469 = vpop.permute.xlu0 %468
        %471 = vset.pattern.permute.xlu0 1
        %472 = vperm.xlu0 %471, %v328
        %v473 = vpop.permute.xlu0 %472
        %475 = vset.pattern.permute.xlu0 1
        %476 = vperm.xlu0 %475, %v329
        %v477 = vpop.permute.xlu0 %476
        %479 = vset.pattern.permute.xlu0 1
        %480 = vperm.xlu0 %479, %v330
        %v481 = vpop.permute.xlu0 %480
        %483 = vset.pattern.permute.xlu0 1
        %484 = vperm.xlu0 %483, %v331
        %v485 = vpop.permute.xlu0 %484
        %487 = vset.pattern.permute.xlu0 1
        %488 = vperm.xlu0 %487, %v332
        %v489 = vpop.permute.xlu0 %488
        %491 = vset.pattern.permute.xlu0 1
        %492 = vperm.xlu0 %491, %v333
        %v493 = vpop.permute.xlu0 %492
        %495 = vset.pattern.permute.xlu0 1
        %496 = vperm.xlu0 %495, %v334
        %v497 = vpop.permute.xlu0 %496
        %499 = vset.pattern.permute.xlu0 1
        %500 = vperm.xlu0 %499, %v335
        %v501 = vpop.permute.xlu0 %500
        %503 = vset.pattern.permute.xlu0 1
        %504 = vperm.xlu0 %503, %v336
        %v505 = vpop.permute.xlu0 %504
        %507 = vset.pattern.permute.xlu0 1
        %508 = vperm.xlu0 %507, %v337
        %v509 = vpop.permute.xlu0 %508
        %511 = vset.pattern.permute.xlu0 1
        %512 = vperm.xlu0 %511, %v338
        %v513 = vpop.permute.xlu0 %512
        %v515 = vadd.f32 %v339, %v453
        %v516 = vadd.f32 %v340, %v457
        %v517 = vadd.f32 %v341, %v461
        %v518 = vadd.f32 %v342, %v465
        %v519 = vadd.f32 %v343, %v469
        %v520 = vadd.f32 %v344, %v473
        %v521 = vadd.f32 %v345, %v477
        %v522 = vadd.f32 %v346, %v481
        %v523 = vadd.f32 %v347, %v485
        %v524 = vadd.f32 %v348, %v489
        %v525 = vadd.f32 %v349, %v493
        %v526 = vadd.f32 %v350, %v497
        %v527 = vadd.f32 %v351, %v501
        %v528 = vadd.f32 %v352, %v505
        %v529 = vadd.f32 %v353, %v509
        %v530 = vadd.f32 %v354, %v513
        %547 = vrot.lane.b32.xlu0 %v515, 124
        %v548 = vpop.permute.xlu0 %547
        %549 = vrot.lane.b32.xlu0 %v516, 124
        %v550 = vpop.permute.xlu0 %549
        %551 = vrot.lane.b32.xlu0 %v517, 124
        %v552 = vpop.permute.xlu0 %551
        %553 = vrot.lane.b32.xlu0 %v518, 124
        %v554 = vpop.permute.xlu0 %553
        %555 = vrot.lane.b32.xlu0 %v519, 124
        %v556 = vpop.permute.xlu0 %555
        %557 = vrot.lane.b32.xlu0 %v520, 124
        %v558 = vpop.permute.xlu0 %557
        %559 = vrot.lane.b32.xlu0 %v521, 124
        %v560 = vpop.permute.xlu0 %559
        %561 = vrot.lane.b32.xlu0 %v522, 124
        %v562 = vpop.permute.xlu0 %561
        %563 = vrot.lane.b32.xlu0 %v523, 124
        %v564 = vpop.permute.xlu0 %563
        %565 = vrot.lane.b32.xlu0 %v524, 124
        %v566 = vpop.permute.xlu0 %565
        %567 = vrot.lane.b32.xlu0 %v525, 124
        %v568 = vpop.permute.xlu0 %567
        %569 = vrot.lane.b32.xlu0 %v526, 124
        %v570 = vpop.permute.xlu0 %569
        %571 = vrot.lane.b32.xlu0 %v527, 124
        %v572 = vpop.permute.xlu0 %571
        %573 = vrot.lane.b32.xlu0 %v528, 124
        %v574 = vpop.permute.xlu0 %573
        %575 = vrot.lane.b32.xlu0 %v529, 124
        %v576 = vpop.permute.xlu0 %575
        %577 = vrot.lane.b32.xlu0 %v530, 124
        %v578 = vpop.permute.xlu0 %577
        %v595 = vmax.f32 %v435, %v548
        %v596 = vmax.f32 %v436, %v550
        %v597 = vmax.f32 %v437, %v552
        %v598 = vmax.f32 %v438, %v554
        %v599 = vmax.f32 %v439, %v556
        %v600 = vmax.f32 %v440, %v558
        %v601 = vmax.f32 %v441, %v560
        %v602 = vmax.f32 %v442, %v562
        %v603 = vmax.f32 %v443, %v564
        %v604 = vmax.f32 %v444, %v566
        %v605 = vmax.f32 %v445, %v568
        %v606 = vmax.f32 %v446, %v570
        %v607 = vmax.f32 %v447, %v572
        %v608 = vmax.f32 %v448, %v574
        %v609 = vmax.f32 %v449, %v576
        %v610 = vmax.f32 %v450, %v578
        %611 = vset.pattern.permute.xlu0 2
        %612 = vperm.xlu0 %611, %v323
        %v613 = vpop.permute.xlu0 %612
        %615 = vset.pattern.permute.xlu0 2
        %616 = vperm.xlu0 %615, %v324
        %v617 = vpop.permute.xlu0 %616
        %619 = vset.pattern.permute.xlu0 2
        %620 = vperm.xlu0 %619, %v325
        %v621 = vpop.permute.xlu0 %620
        %623 = vset.pattern.permute.xlu0 2
        %624 = vperm.xlu0 %623, %v326
        %v625 = vpop.permute.xlu0 %624
        %627 = vset.pattern.permute.xlu0 2
        %628 = vperm.xlu0 %627, %v327
        %v629 = vpop.permute.xlu0 %628
        %631 = vset.pattern.permute.xlu0 2
        %632 = vperm.xlu0 %631, %v328
        %v633 = vpop.permute.xlu0 %632
        %635 = vset.pattern.permute.xlu0 2
        %636 = vperm.xlu0 %635, %v329
        %v637 = vpop.permute.xlu0 %636
        %639 = vset.pattern.permute.xlu0 2
        %640 = vperm.xlu0 %639, %v330
        %v641 = vpop.permute.xlu0 %640
        %643 = vset.pattern.permute.xlu0 2
        %644 = vperm.xlu0 %643, %v331
        %v645 = vpop.permute.xlu0 %644
        %647 = vset.pattern.permute.xlu0 2
        %648 = vperm.xlu0 %647, %v332
        %v649 = vpop.permute.xlu0 %648
        %651 = vset.pattern.permute.xlu0 2
        %652 = vperm.xlu0 %651, %v333
        %v653 = vpop.permute.xlu0 %652
        %655 = vset.pattern.permute.xlu0 2
        %656 = vperm.xlu0 %655, %v334
        %v657 = vpop.permute.xlu0 %656
        %659 = vset.pattern.permute.xlu0 2
        %660 = vperm.xlu0 %659, %v335
        %v661 = vpop.permute.xlu0 %660
        %663 = vset.pattern.permute.xlu0 2
        %664 = vperm.xlu0 %663, %v336
        %v665 = vpop.permute.xlu0 %664
        %667 = vset.pattern.permute.xlu0 2
        %668 = vperm.xlu0 %667, %v337
        %v669 = vpop.permute.xlu0 %668
        %671 = vset.pattern.permute.xlu0 2
        %672 = vperm.xlu0 %671, %v338
        %v673 = vpop.permute.xlu0 %672
        %v675 = vadd.f32 %v339, %v613
        %v676 = vadd.f32 %v340, %v617
        %v677 = vadd.f32 %v341, %v621
        %v678 = vadd.f32 %v342, %v625
        %v679 = vadd.f32 %v343, %v629
        %v680 = vadd.f32 %v344, %v633
        %v681 = vadd.f32 %v345, %v637
        %v682 = vadd.f32 %v346, %v641
        %v683 = vadd.f32 %v347, %v645
        %v684 = vadd.f32 %v348, %v649
        %v685 = vadd.f32 %v349, %v653
        %v686 = vadd.f32 %v350, %v657
        %v687 = vadd.f32 %v351, %v661
        %v688 = vadd.f32 %v352, %v665
        %v689 = vadd.f32 %v353, %v669
        %v690 = vadd.f32 %v354, %v673
        %707 = vrot.lane.b32.xlu0 %v675, 120
        %v708 = vpop.permute.xlu0 %707
        %709 = vrot.lane.b32.xlu0 %v676, 120
        %v710 = vpop.permute.xlu0 %709
        %711 = vrot.lane.b32.xlu0 %v677, 120
        %v712 = vpop.permute.xlu0 %711
        %713 = vrot.lane.b32.xlu0 %v678, 120
        %v714 = vpop.permute.xlu0 %713
        %715 = vrot.lane.b32.xlu0 %v679, 120
        %v716 = vpop.permute.xlu0 %715
        %717 = vrot.lane.b32.xlu0 %v680, 120
        %v718 = vpop.permute.xlu0 %717
        %719 = vrot.lane.b32.xlu0 %v681, 120
        %v720 = vpop.permute.xlu0 %719
        %721 = vrot.lane.b32.xlu0 %v682, 120
        %v722 = vpop.permute.xlu0 %721
        %723 = vrot.lane.b32.xlu0 %v683, 120
        %v724 = vpop.permute.xlu0 %723
        %725 = vrot.lane.b32.xlu0 %v684, 120
        %v726 = vpop.permute.xlu0 %725
        %727 = vrot.lane.b32.xlu0 %v685, 120
        %v728 = vpop.permute.xlu0 %727
        %729 = vrot.lane.b32.xlu0 %v686, 120
        %v730 = vpop.permute.xlu0 %729
        %731 = vrot.lane.b32.xlu0 %v687, 120
        %v732 = vpop.permute.xlu0 %731
        %733 = vrot.lane.b32.xlu0 %v688, 120
        %v734 = vpop.permute.xlu0 %733
        %735 = vrot.lane.b32.xlu0 %v689, 120
        %v736 = vpop.permute.xlu0 %735
        %737 = vrot.lane.b32.xlu0 %v690, 120
        %v738 = vpop.permute.xlu0 %737
        %v755 = vmax.f32 %v595, %v708
        %v756 = vmax.f32 %v596, %v710
        %v757 = vmax.f32 %v597, %v712
        %v758 = vmax.f32 %v598, %v714
        %v759 = vmax.f32 %v599, %v716
        %v760 = vmax.f32 %v600, %v718
        %v761 = vmax.f32 %v601, %v720
        %v762 = vmax.f32 %v602, %v722
        %v763 = vmax.f32 %v603, %v724
        %v764 = vmax.f32 %v604, %v726
        %v765 = vmax.f32 %v605, %v728
        %v766 = vmax.f32 %v606, %v730
        %v767 = vmax.f32 %v607, %v732
        %v768 = vmax.f32 %v608, %v734
        %v769 = vmax.f32 %v609, %v736
        %v770 = vmax.f32 %v610, %v738
        %771 = vset.pattern.permute.xlu0 3
        %772 = vperm.xlu0 %771, %v323
        %v773 = vpop.permute.xlu0 %772
        %775 = vset.pattern.permute.xlu0 3
        %776 = vperm.xlu0 %775, %v324
        %v777 = vpop.permute.xlu0 %776
        %779 = vset.pattern.permute.xlu0 3
        %780 = vperm.xlu0 %779, %v325
        %v781 = vpop.permute.xlu0 %780
        %783 = vset.pattern.permute.xlu0 3
        %784 = vperm.xlu0 %783, %v326
        %v785 = vpop.permute.xlu0 %784
        %787 = vset.pattern.permute.xlu0 3
        %788 = vperm.xlu0 %787, %v327
        %v789 = vpop.permute.xlu0 %788
        %791 = vset.pattern.permute.xlu0 3
        %792 = vperm.xlu0 %791, %v328
        %v793 = vpop.permute.xlu0 %792
        %795 = vset.pattern.permute.xlu0 3
        %796 = vperm.xlu0 %795, %v329
        %v797 = vpop.permute.xlu0 %796
        %799 = vset.pattern.permute.xlu0 3
        %800 = vperm.xlu0 %799, %v330
        %v801 = vpop.permute.xlu0 %800
        %803 = vset.pattern.permute.xlu0 3
        %804 = vperm.xlu0 %803, %v331
        %v805 = vpop.permute.xlu0 %804
        %807 = vset.pattern.permute.xlu0 3
        %808 = vperm.xlu0 %807, %v332
        %v809 = vpop.permute.xlu0 %808
        %811 = vset.pattern.permute.xlu0 3
        %812 = vperm.xlu0 %811, %v333
        %v813 = vpop.permute.xlu0 %812
        %815 = vset.pattern.permute.xlu0 3
        %816 = vperm.xlu0 %815, %v334
        %v817 = vpop.permute.xlu0 %816
        %819 = vset.pattern.permute.xlu0 3
        %820 = vperm.xlu0 %819, %v335
        %v821 = vpop.permute.xlu0 %820
        %823 = vset.pattern.permute.xlu0 3
        %824 = vperm.xlu0 %823, %v336
        %v825 = vpop.permute.xlu0 %824
        %827 = vset.pattern.permute.xlu0 3
        %828 = vperm.xlu0 %827, %v337
        %v829 = vpop.permute.xlu0 %828
        %831 = vset.pattern.permute.xlu0 3
        %832 = vperm.xlu0 %831, %v338
        %v833 = vpop.permute.xlu0 %832
        %v835 = vadd.f32 %v339, %v773
        %v836 = vadd.f32 %v340, %v777
        %v837 = vadd.f32 %v341, %v781
        %v838 = vadd.f32 %v342, %v785
        %v839 = vadd.f32 %v343, %v789
        %v840 = vadd.f32 %v344, %v793
        %v841 = vadd.f32 %v345, %v797
        %v842 = vadd.f32 %v346, %v801
        %v843 = vadd.f32 %v347, %v805
        %v844 = vadd.f32 %v348, %v809
        %v845 = vadd.f32 %v349, %v813
        %v846 = vadd.f32 %v350, %v817
        %v847 = vadd.f32 %v351, %v821
        %v848 = vadd.f32 %v352, %v825
        %v849 = vadd.f32 %v353, %v829
        %v850 = vadd.f32 %v354, %v833
        %867 = vrot.lane.b32.xlu0 %v835, 108
        %v868 = vpop.permute.xlu0 %867
        %869 = vrot.lane.b32.xlu0 %v836, 108
        %v870 = vpop.permute.xlu0 %869
        %871 = vrot.lane.b32.xlu0 %v837, 108
        %v872 = vpop.permute.xlu0 %871
        %873 = vrot.lane.b32.xlu0 %v838, 108
        %v874 = vpop.permute.xlu0 %873
        %875 = vrot.lane.b32.xlu0 %v839, 108
        %v876 = vpop.permute.xlu0 %875
        %877 = vrot.lane.b32.xlu0 %v840, 108
        %v878 = vpop.permute.xlu0 %877
        %879 = vrot.lane.b32.xlu0 %v841, 108
        %v880 = vpop.permute.xlu0 %879
        %881 = vrot.lane.b32.xlu0 %v842, 108
        %v882 = vpop.permute.xlu0 %881
        %883 = vrot.lane.b32.xlu0 %v843, 108
        %v884 = vpop.permute.xlu0 %883
        %885 = vrot.lane.b32.xlu0 %v844, 108
        %v886 = vpop.permute.xlu0 %885
        %887 = vrot.lane.b32.xlu0 %v845, 108
        %v888 = vpop.permute.xlu0 %887
        %889 = vrot.lane.b32.xlu0 %v846, 108
        %v890 = vpop.permute.xlu0 %889
        %891 = vrot.lane.b32.xlu0 %v847, 108
        %v892 = vpop.permute.xlu0 %891
        %893 = vrot.lane.b32.xlu0 %v848, 108
        %v894 = vpop.permute.xlu0 %893
        %895 = vrot.lane.b32.xlu0 %v849, 108
        %v896 = vpop.permute.xlu0 %895
        %897 = vrot.lane.b32.xlu0 %v850, 108
        %v898 = vpop.permute.xlu0 %897
        %v915 = vmax.f32 %v755, %v868
        %v916 = vmax.f32 %v756, %v870
        %v917 = vmax.f32 %v757, %v872
        %v918 = vmax.f32 %v758, %v874
        %v919 = vmax.f32 %v759, %v876
        %v920 = vmax.f32 %v760, %v878
        %v921 = vmax.f32 %v761, %v880
        %v922 = vmax.f32 %v762, %v882
        %v923 = vmax.f32 %v763, %v884
        %v924 = vmax.f32 %v764, %v886
        %v925 = vmax.f32 %v765, %v888
        %v926 = vmax.f32 %v766, %v890
        %v927 = vmax.f32 %v767, %v892
        %v928 = vmax.f32 %v768, %v894
        %v929 = vmax.f32 %v769, %v896
        %v930 = vmax.f32 %v770, %v898
        %931 = vset.pattern.permute.xlu0 4
        %932 = vperm.xlu0 %931, %v323
        %v933 = vpop.permute.xlu0 %932
        %935 = vset.pattern.permute.xlu0 4
        %936 = vperm.xlu0 %935, %v324
        %v937 = vpop.permute.xlu0 %936
        %939 = vset.pattern.permute.xlu0 4
        %940 = vperm.xlu0 %939, %v325
        %v941 = vpop.permute.xlu0 %940
        %943 = vset.pattern.permute.xlu0 4
        %944 = vperm.xlu0 %943, %v326
        %v945 = vpop.permute.xlu0 %944
        %947 = vset.pattern.permute.xlu0 4
        %948 = vperm.xlu0 %947, %v327
        %v949 = vpop.permute.xlu0 %948
        %951 = vset.pattern.permute.xlu0 4
        %952 = vperm.xlu0 %951, %v328
        %v953 = vpop.permute.xlu0 %952
        %955 = vset.pattern.permute.xlu0 4
        %956 = vperm.xlu0 %955, %v329
        %v957 = vpop.permute.xlu0 %956
        %959 = vset.pattern.permute.xlu0 4
        %960 = vperm.xlu0 %959, %v330
        %v961 = vpop.permute.xlu0 %960
        %963 = vset.pattern.permute.xlu0 4
        %964 = vperm.xlu0 %963, %v331
        %v965 = vpop.permute.xlu0 %964
        %967 = vset.pattern.permute.xlu0 4
        %968 = vperm.xlu0 %967, %v332
        %v969 = vpop.permute.xlu0 %968
        %971 = vset.pattern.permute.xlu0 4
        %972 = vperm.xlu0 %971, %v333
        %v973 = vpop.permute.xlu0 %972
        %975 = vset.pattern.permute.xlu0 4
        %976 = vperm.xlu0 %975, %v334
        %v977 = vpop.permute.xlu0 %976
        %979 = vset.pattern.permute.xlu0 4
        %980 = vperm.xlu0 %979, %v335
        %v981 = vpop.permute.xlu0 %980
        %983 = vset.pattern.permute.xlu0 4
        %984 = vperm.xlu0 %983, %v336
        %v985 = vpop.permute.xlu0 %984
        %987 = vset.pattern.permute.xlu0 4
        %988 = vperm.xlu0 %987, %v337
        %v989 = vpop.permute.xlu0 %988
        %991 = vset.pattern.permute.xlu0 4
        %992 = vperm.xlu0 %991, %v338
        %v993 = vpop.permute.xlu0 %992
        %v995 = vadd.f32 %v339, %v933
        %v996 = vadd.f32 %v340, %v937
        %v997 = vadd.f32 %v341, %v941
        %v998 = vadd.f32 %v342, %v945
        %v999 = vadd.f32 %v343, %v949
        %v1000 = vadd.f32 %v344, %v953
        %v1001 = vadd.f32 %v345, %v957
        %v1002 = vadd.f32 %v346, %v961
        %v1003 = vadd.f32 %v347, %v965
        %v1004 = vadd.f32 %v348, %v969
        %v1005 = vadd.f32 %v349, %v973
        %v1006 = vadd.f32 %v350, %v977
        %v1007 = vadd.f32 %v351, %v981
        %v1008 = vadd.f32 %v352, %v985
        %v1009 = vadd.f32 %v353, %v989
        %v1010 = vadd.f32 %v354, %v993
        %1027 = vrot.lane.b32.xlu0 %v995, 104
        %v1028 = vpop.permute.xlu0 %1027
        %1029 = vrot.lane.b32.xlu0 %v996, 104
        %v1030 = vpop.permute.xlu0 %1029
        %1031 = vrot.lane.b32.xlu0 %v997, 104
        %v1032 = vpop.permute.xlu0 %1031
        %1033 = vrot.lane.b32.xlu0 %v998, 104
        %v1034 = vpop.permute.xlu0 %1033
        %1035 = vrot.lane.b32.xlu0 %v999, 104
        %v1036 = vpop.permute.xlu0 %1035
        %1037 = vrot.lane.b32.xlu0 %v1000, 104
        %v1038 = vpop.permute.xlu0 %1037
        %1039 = vrot.lane.b32.xlu0 %v1001, 104
        %v1040 = vpop.permute.xlu0 %1039
        %1041 = vrot.lane.b32.xlu0 %v1002, 104
        %v1042 = vpop.permute.xlu0 %1041
        %1043 = vrot.lane.b32.xlu0 %v1003, 104
        %v1044 = vpop.permute.xlu0 %1043
        %1045 = vrot.lane.b32.xlu0 %v1004, 104
        %v1046 = vpop.permute.xlu0 %1045
        %1047 = vrot.lane.b32.xlu0 %v1005, 104
        %v1048 = vpop.permute.xlu0 %1047
        %1049 = vrot.lane.b32.xlu0 %v1006, 104
        %v1050 = vpop.permute.xlu0 %1049
        %1051 = vrot.lane.b32.xlu0 %v1007, 104
        %v1052 = vpop.permute.xlu0 %1051
        %1053 = vrot.lane.b32.xlu0 %v1008, 104
        %v1054 = vpop.permute.xlu0 %1053
        %1055 = vrot.lane.b32.xlu0 %v1009, 104
        %v1056 = vpop.permute.xlu0 %1055
        %1057 = vrot.lane.b32.xlu0 %v1010, 104
        %v1058 = vpop.permute.xlu0 %1057
        %v1075 = vmax.f32 %v915, %v1028
        %v1076 = vmax.f32 %v916, %v1030
        %v1077 = vmax.f32 %v917, %v1032
        %v1078 = vmax.f32 %v918, %v1034
        %v1079 = vmax.f32 %v919, %v1036
        %v1080 = vmax.f32 %v920, %v1038
        %v1081 = vmax.f32 %v921, %v1040
        %v1082 = vmax.f32 %v922, %v1042
        %v1083 = vmax.f32 %v923, %v1044
        %v1084 = vmax.f32 %v924, %v1046
        %v1085 = vmax.f32 %v925, %v1048
        %v1086 = vmax.f32 %v926, %v1050
        %v1087 = vmax.f32 %v927, %v1052
        %v1088 = vmax.f32 %v928, %v1054
        %v1089 = vmax.f32 %v929, %v1056
        %v1090 = vmax.f32 %v930, %v1058
        %1091 = vset.pattern.permute.xlu0 5
        %1092 = vperm.xlu0 %1091, %v323
        %v1093 = vpop.permute.xlu0 %1092
        %1095 = vset.pattern.permute.xlu0 5
        %1096 = vperm.xlu0 %1095, %v324
        %v1097 = vpop.permute.xlu0 %1096
        %1099 = vset.pattern.permute.xlu0 5
        %1100 = vperm.xlu0 %1099, %v325
        %v1101 = vpop.permute.xlu0 %1100
        %1103 = vset.pattern.permute.xlu0 5
        %1104 = vperm.xlu0 %1103, %v326
        %v1105 = vpop.permute.xlu0 %1104
        %1107 = vset.pattern.permute.xlu0 5
        %1108 = vperm.xlu0 %1107, %v327
        %v1109 = vpop.permute.xlu0 %1108
        %1111 = vset.pattern.permute.xlu0 5
        %1112 = vperm.xlu0 %1111, %v328
        %v1113 = vpop.permute.xlu0 %1112
        %1115 = vset.pattern.permute.xlu0 5
        %1116 = vperm.xlu0 %1115, %v329
        %v1117 = vpop.permute.xlu0 %1116
        %1119 = vset.pattern.permute.xlu0 5
        %1120 = vperm.xlu0 %1119, %v330
        %v1121 = vpop.permute.xlu0 %1120
        %1123 = vset.pattern.permute.xlu0 5
        %1124 = vperm.xlu0 %1123, %v331
        %v1125 = vpop.permute.xlu0 %1124
        %1127 = vset.pattern.permute.xlu0 5
        %1128 = vperm.xlu0 %1127, %v332
        %v1129 = vpop.permute.xlu0 %1128
        %1131 = vset.pattern.permute.xlu0 5
        %1132 = vperm.xlu0 %1131, %v333
        %v1133 = vpop.permute.xlu0 %1132
        %1135 = vset.pattern.permute.xlu0 5
        %1136 = vperm.xlu0 %1135, %v334
        %v1137 = vpop.permute.xlu0 %1136
        %1139 = vset.pattern.permute.xlu0 5
        %1140 = vperm.xlu0 %1139, %v335
        %v1141 = vpop.permute.xlu0 %1140
        %1143 = vset.pattern.permute.xlu0 5
        %1144 = vperm.xlu0 %1143, %v336
        %v1145 = vpop.permute.xlu0 %1144
        %1147 = vset.pattern.permute.xlu0 5
        %1148 = vperm.xlu0 %1147, %v337
        %v1149 = vpop.permute.xlu0 %1148
        %1151 = vset.pattern.permute.xlu0 5
        %1152 = vperm.xlu0 %1151, %v338
        %v1153 = vpop.permute.xlu0 %1152
        %v1155 = vadd.f32 %v339, %v1093
        %v1156 = vadd.f32 %v340, %v1097
        %v1157 = vadd.f32 %v341, %v1101
        %v1158 = vadd.f32 %v342, %v1105
        %v1159 = vadd.f32 %v343, %v1109
        %v1160 = vadd.f32 %v344, %v1113
        %v1161 = vadd.f32 %v345, %v1117
        %v1162 = vadd.f32 %v346, %v1121
        %v1163 = vadd.f32 %v347, %v1125
        %v1164 = vadd.f32 %v348, %v1129
        %v1165 = vadd.f32 %v349, %v1133
        %v1166 = vadd.f32 %v350, %v1137
        %v1167 = vadd.f32 %v351, %v1141
        %v1168 = vadd.f32 %v352, %v1145
        %v1169 = vadd.f32 %v353, %v1149
        %v1170 = vadd.f32 %v354, %v1153
        %1187 = vrot.lane.b32.xlu0 %v1155, 100
        %v1188 = vpop.permute.xlu0 %1187
        %1189 = vrot.lane.b32.xlu0 %v1156, 100
        %v1190 = vpop.permute.xlu0 %1189
        %1191 = vrot.lane.b32.xlu0 %v1157, 100
        %v1192 = vpop.permute.xlu0 %1191
        %1193 = vrot.lane.b32.xlu0 %v1158, 100
        %v1194 = vpop.permute.xlu0 %1193
        %1195 = vrot.lane.b32.xlu0 %v1159, 100
        %v1196 = vpop.permute.xlu0 %1195
        %1197 = vrot.lane.b32.xlu0 %v1160, 100
        %v1198 = vpop.permute.xlu0 %1197
        %1199 = vrot.lane.b32.xlu0 %v1161, 100
        %v1200 = vpop.permute.xlu0 %1199
        %1201 = vrot.lane.b32.xlu0 %v1162, 100
        %v1202 = vpop.permute.xlu0 %1201
        %1203 = vrot.lane.b32.xlu0 %v1163, 100
        %v1204 = vpop.permute.xlu0 %1203
        %1205 = vrot.lane.b32.xlu0 %v1164, 100
        %v1206 = vpop.permute.xlu0 %1205
        %1207 = vrot.lane.b32.xlu0 %v1165, 100
        %v1208 = vpop.permute.xlu0 %1207
        %1209 = vrot.lane.b32.xlu0 %v1166, 100
        %v1210 = vpop.permute.xlu0 %1209
        %1211 = vrot.lane.b32.xlu0 %v1167, 100
        %v1212 = vpop.permute.xlu0 %1211
        %1213 = vrot.lane.b32.xlu0 %v1168, 100
        %v1214 = vpop.permute.xlu0 %1213
        %1215 = vrot.lane.b32.xlu0 %v1169, 100
        %v1216 = vpop.permute.xlu0 %1215
        %1217 = vrot.lane.b32.xlu0 %v1170, 100
        %v1218 = vpop.permute.xlu0 %1217
        %v1235 = vmax.f32 %v1075, %v1188
        %v1236 = vmax.f32 %v1076, %v1190
        %v1237 = vmax.f32 %v1077, %v1192
        %v1238 = vmax.f32 %v1078, %v1194
        %v1239 = vmax.f32 %v1079, %v1196
        %v1240 = vmax.f32 %v1080, %v1198
        %v1241 = vmax.f32 %v1081, %v1200
        %v1242 = vmax.f32 %v1082, %v1202
        %v1243 = vmax.f32 %v1083, %v1204
        %v1244 = vmax.f32 %v1084, %v1206
        %v1245 = vmax.f32 %v1085, %v1208
        %v1246 = vmax.f32 %v1086, %v1210
        %v1247 = vmax.f32 %v1087, %v1212
        %v1248 = vmax.f32 %v1088, %v1214
        %v1249 = vmax.f32 %v1089, %v1216
        %v1250 = vmax.f32 %v1090, %v1218
        %1251 = vset.pattern.permute.xlu0 6
        %1252 = vperm.xlu0 %1251, %v323
        %v1253 = vpop.permute.xlu0 %1252
        %1255 = vset.pattern.permute.xlu0 6
        %1256 = vperm.xlu0 %1255, %v324
        %v1257 = vpop.permute.xlu0 %1256
        %1259 = vset.pattern.permute.xlu0 6
        %1260 = vperm.xlu0 %1259, %v325
        %v1261 = vpop.permute.xlu0 %1260
        %1263 = vset.pattern.permute.xlu0 6
        %1264 = vperm.xlu0 %1263, %v326
        %v1265 = vpop.permute.xlu0 %1264
        %1267 = vset.pattern.permute.xlu0 6
        %1268 = vperm.xlu0 %1267, %v327
        %v1269 = vpop.permute.xlu0 %1268
        %1271 = vset.pattern.permute.xlu0 6
        %1272 = vperm.xlu0 %1271, %v328
        %v1273 = vpop.permute.xlu0 %1272
        %1275 = vset.pattern.permute.xlu0 6
        %1276 = vperm.xlu0 %1275, %v329
        %v1277 = vpop.permute.xlu0 %1276
        %1279 = vset.pattern.permute.xlu0 6
        %1280 = vperm.xlu0 %1279, %v330
        %v1281 = vpop.permute.xlu0 %1280
        %1283 = vset.pattern.permute.xlu0 6
        %1284 = vperm.xlu0 %1283, %v331
        %v1285 = vpop.permute.xlu0 %1284
        %1287 = vset.pattern.permute.xlu0 6
        %1288 = vperm.xlu0 %1287, %v332
        %v1289 = vpop.permute.xlu0 %1288
        %1291 = vset.pattern.permute.xlu0 6
        %1292 = vperm.xlu0 %1291, %v333
        %v1293 = vpop.permute.xlu0 %1292
        %1295 = vset.pattern.permute.xlu0 6
        %1296 = vperm.xlu0 %1295, %v334
        %v1297 = vpop.permute.xlu0 %1296
        %1299 = vset.pattern.permute.xlu0 6
        %1300 = vperm.xlu0 %1299, %v335
        %v1301 = vpop.permute.xlu0 %1300
        %1303 = vset.pattern.permute.xlu0 6
        %1304 = vperm.xlu0 %1303, %v336
        %v1305 = vpop.permute.xlu0 %1304
        %1307 = vset.pattern.permute.xlu0 6
        %1308 = vperm.xlu0 %1307, %v337
        %v1309 = vpop.permute.xlu0 %1308
        %1311 = vset.pattern.permute.xlu0 6
        %1312 = vperm.xlu0 %1311, %v338
        %v1313 = vpop.permute.xlu0 %1312
        %v1315 = vadd.f32 %v339, %v1253
        %v1316 = vadd.f32 %v340, %v1257
        %v1317 = vadd.f32 %v341, %v1261
        %v1318 = vadd.f32 %v342, %v1265
        %v1319 = vadd.f32 %v343, %v1269
        %v1320 = vadd.f32 %v344, %v1273
        %v1321 = vadd.f32 %v345, %v1277
        %v1322 = vadd.f32 %v346, %v1281
        %v1323 = vadd.f32 %v347, %v1285
        %v1324 = vadd.f32 %v348, %v1289
        %v1325 = vadd.f32 %v349, %v1293
        %v1326 = vadd.f32 %v350, %v1297
        %v1327 = vadd.f32 %v351, %v1301
        %v1328 = vadd.f32 %v352, %v1305
        %v1329 = vadd.f32 %v353, %v1309
        %v1330 = vadd.f32 %v354, %v1313
        %1347 = vrot.lane.b32.xlu0 %v1315, 88
        %v1348 = vpop.permute.xlu0 %1347
        %1349 = vrot.lane.b32.xlu0 %v1316, 88
        %v1350 = vpop.permute.xlu0 %1349
        %1351 = vrot.lane.b32.xlu0 %v1317, 88
        %v1352 = vpop.permute.xlu0 %1351
        %1353 = vrot.lane.b32.xlu0 %v1318, 88
        %v1354 = vpop.permute.xlu0 %1353
        %1355 = vrot.lane.b32.xlu0 %v1319, 88
        %v1356 = vpop.permute.xlu0 %1355
        %1357 = vrot.lane.b32.xlu0 %v1320, 88
        %v1358 = vpop.permute.xlu0 %1357
        %1359 = vrot.lane.b32.xlu0 %v1321, 88
        %v1360 = vpop.permute.xlu0 %1359
        %1361 = vrot.lane.b32.xlu0 %v1322, 88
        %v1362 = vpop.permute.xlu0 %1361
        %1363 = vrot.lane.b32.xlu0 %v1323, 88
        %v1364 = vpop.permute.xlu0 %1363
        %1365 = vrot.lane.b32.xlu0 %v1324, 88
        %v1366 = vpop.permute.xlu0 %1365
        %1367 = vrot.lane.b32.xlu0 %v1325, 88
        %v1368 = vpop.permute.xlu0 %1367
        %1369 = vrot.lane.b32.xlu0 %v1326, 88
        %v1370 = vpop.permute.xlu0 %1369
        %1371 = vrot.lane.b32.xlu0 %v1327, 88
        %v1372 = vpop.permute.xlu0 %1371
        %1373 = vrot.lane.b32.xlu0 %v1328, 88
        %v1374 = vpop.permute.xlu0 %1373
        %1375 = vrot.lane.b32.xlu0 %v1329, 88
        %v1376 = vpop.permute.xlu0 %1375
        %1377 = vrot.lane.b32.xlu0 %v1330, 88
        %v1378 = vpop.permute.xlu0 %1377
        %v1395 = vmax.f32 %v1235, %v1348
        %v1396 = vmax.f32 %v1236, %v1350
        %v1397 = vmax.f32 %v1237, %v1352
        %v1398 = vmax.f32 %v1238, %v1354
        %v1399 = vmax.f32 %v1239, %v1356
        %v1400 = vmax.f32 %v1240, %v1358
        %v1401 = vmax.f32 %v1241, %v1360
        %v1402 = vmax.f32 %v1242, %v1362
        %v1403 = vmax.f32 %v1243, %v1364
        %v1404 = vmax.f32 %v1244, %v1366
        %v1405 = vmax.f32 %v1245, %v1368
        %v1406 = vmax.f32 %v1246, %v1370
        %v1407 = vmax.f32 %v1247, %v1372
        %v1408 = vmax.f32 %v1248, %v1374
        %v1409 = vmax.f32 %v1249, %v1376
        %v1410 = vmax.f32 %v1250, %v1378
        %1411 = vset.pattern.permute.xlu0 7
        %1412 = vperm.xlu0 %1411, %v323
        %v1413 = vpop.permute.xlu0 %1412
        %1415 = vset.pattern.permute.xlu0 7
        %1416 = vperm.xlu0 %1415, %v324
        %v1417 = vpop.permute.xlu0 %1416
        %1419 = vset.pattern.permute.xlu0 7
        %1420 = vperm.xlu0 %1419, %v325
        %v1421 = vpop.permute.xlu0 %1420
        %1423 = vset.pattern.permute.xlu0 7
        %1424 = vperm.xlu0 %1423, %v326
        %v1425 = vpop.permute.xlu0 %1424
        %1427 = vset.pattern.permute.xlu0 7
        %1428 = vperm.xlu0 %1427, %v327
        %v1429 = vpop.permute.xlu0 %1428
        %1431 = vset.pattern.permute.xlu0 7
        %1432 = vperm.xlu0 %1431, %v328
        %v1433 = vpop.permute.xlu0 %1432
        %1435 = vset.pattern.permute.xlu0 7
        %1436 = vperm.xlu0 %1435, %v329
        %v1437 = vpop.permute.xlu0 %1436
        %1439 = vset.pattern.permute.xlu0 7
        %1440 = vperm.xlu0 %1439, %v330
        %v1441 = vpop.permute.xlu0 %1440
        %1443 = vset.pattern.permute.xlu0 7
        %1444 = vperm.xlu0 %1443, %v331
        %v1445 = vpop.permute.xlu0 %1444
        %1447 = vset.pattern.permute.xlu0 7
        %1448 = vperm.xlu0 %1447, %v332
        %v1449 = vpop.permute.xlu0 %1448
        %1451 = vset.pattern.permute.xlu0 7
        %1452 = vperm.xlu0 %1451, %v333
        %v1453 = vpop.permute.xlu0 %1452
        %1455 = vset.pattern.permute.xlu0 7
        %1456 = vperm.xlu0 %1455, %v334
        %v1457 = vpop.permute.xlu0 %1456
        %1459 = vset.pattern.permute.xlu0 7
        %1460 = vperm.xlu0 %1459, %v335
        %v1461 = vpop.permute.xlu0 %1460
        %1463 = vset.pattern.permute.xlu0 7
        %1464 = vperm.xlu0 %1463, %v336
        %v1465 = vpop.permute.xlu0 %1464
        %1467 = vset.pattern.permute.xlu0 7
        %1468 = vperm.xlu0 %1467, %v337
        %v1469 = vpop.permute.xlu0 %1468
        %1471 = vset.pattern.permute.xlu0 7
        %1472 = vperm.xlu0 %1471, %v338
        %v1473 = vpop.permute.xlu0 %1472
        %v1475 = vadd.f32 %v339, %v1413
        %v1476 = vadd.f32 %v340, %v1417
        %v1477 = vadd.f32 %v341, %v1421
        %v1478 = vadd.f32 %v342, %v1425
        %v1479 = vadd.f32 %v343, %v1429
        %v1480 = vadd.f32 %v344, %v1433
        %v1481 = vadd.f32 %v345, %v1437
        %v1482 = vadd.f32 %v346, %v1441
        %v1483 = vadd.f32 %v347, %v1445
        %v1484 = vadd.f32 %v348, %v1449
        %v1485 = vadd.f32 %v349, %v1453
        %v1486 = vadd.f32 %v350, %v1457
        %v1487 = vadd.f32 %v351, %v1461
        %v1488 = vadd.f32 %v352, %v1465
        %v1489 = vadd.f32 %v353, %v1469
        %v1490 = vadd.f32 %v354, %v1473
        %1507 = vrot.lane.b32.xlu0 %v1475, 84
        %v1508 = vpop.permute.xlu0 %1507
        %1509 = vrot.lane.b32.xlu0 %v1476, 84
        %v1510 = vpop.permute.xlu0 %1509
        %1511 = vrot.lane.b32.xlu0 %v1477, 84
        %v1512 = vpop.permute.xlu0 %1511
        %1513 = vrot.lane.b32.xlu0 %v1478, 84
        %v1514 = vpop.permute.xlu0 %1513
        %1515 = vrot.lane.b32.xlu0 %v1479, 84
        %v1516 = vpop.permute.xlu0 %1515
        %1517 = vrot.lane.b32.xlu0 %v1480, 84
        %v1518 = vpop.permute.xlu0 %1517
        %1519 = vrot.lane.b32.xlu0 %v1481, 84
        %v1520 = vpop.permute.xlu0 %1519
        %1521 = vrot.lane.b32.xlu0 %v1482, 84
        %v1522 = vpop.permute.xlu0 %1521
        %1523 = vrot.lane.b32.xlu0 %v1483, 84
        %v1524 = vpop.permute.xlu0 %1523
        %1525 = vrot.lane.b32.xlu0 %v1484, 84
        %v1526 = vpop.permute.xlu0 %1525
        %1527 = vrot.lane.b32.xlu0 %v1485, 84
        %v1528 = vpop.permute.xlu0 %1527
        %1529 = vrot.lane.b32.xlu0 %v1486, 84
        %v1530 = vpop.permute.xlu0 %1529
        %1531 = vrot.lane.b32.xlu0 %v1487, 84
        %v1532 = vpop.permute.xlu0 %1531
        %1533 = vrot.lane.b32.xlu0 %v1488, 84
        %v1534 = vpop.permute.xlu0 %1533
        %1535 = vrot.lane.b32.xlu0 %v1489, 84
        %v1536 = vpop.permute.xlu0 %1535
        %1537 = vrot.lane.b32.xlu0 %v1490, 84
        %v1538 = vpop.permute.xlu0 %1537
        %v1555 = vmax.f32 %v1395, %v1508
        %v1556 = vmax.f32 %v1396, %v1510
        %v1557 = vmax.f32 %v1397, %v1512
        %v1558 = vmax.f32 %v1398, %v1514
        %v1559 = vmax.f32 %v1399, %v1516
        %v1560 = vmax.f32 %v1400, %v1518
        %v1561 = vmax.f32 %v1401, %v1520
        %v1562 = vmax.f32 %v1402, %v1522
        %v1563 = vmax.f32 %v1403, %v1524
        %v1564 = vmax.f32 %v1404, %v1526
        %v1565 = vmax.f32 %v1405, %v1528
        %v1566 = vmax.f32 %v1406, %v1530
        %v1567 = vmax.f32 %v1407, %v1532
        %v1568 = vmax.f32 %v1408, %v1534
        %v1569 = vmax.f32 %v1409, %v1536
        %v1570 = vmax.f32 %v1410, %v1538
        %1571 = vset.pattern.permute.xlu0 8
        %1572 = vperm.xlu0 %1571, %v323
        %v1573 = vpop.permute.xlu0 %1572
        %1575 = vset.pattern.permute.xlu0 8
        %1576 = vperm.xlu0 %1575, %v324
        %v1577 = vpop.permute.xlu0 %1576
        %1579 = vset.pattern.permute.xlu0 8
        %1580 = vperm.xlu0 %1579, %v325
        %v1581 = vpop.permute.xlu0 %1580
        %1583 = vset.pattern.permute.xlu0 8
        %1584 = vperm.xlu0 %1583, %v326
        %v1585 = vpop.permute.xlu0 %1584
        %1587 = vset.pattern.permute.xlu0 8
        %1588 = vperm.xlu0 %1587, %v327
        %v1589 = vpop.permute.xlu0 %1588
        %1591 = vset.pattern.permute.xlu0 8
        %1592 = vperm.xlu0 %1591, %v328
        %v1593 = vpop.permute.xlu0 %1592
        %1595 = vset.pattern.permute.xlu0 8
        %1596 = vperm.xlu0 %1595, %v329
        %v1597 = vpop.permute.xlu0 %1596
        %1599 = vset.pattern.permute.xlu0 8
        %1600 = vperm.xlu0 %1599, %v330
        %v1601 = vpop.permute.xlu0 %1600
        %1603 = vset.pattern.permute.xlu0 8
        %1604 = vperm.xlu0 %1603, %v331
        %v1605 = vpop.permute.xlu0 %1604
        %1607 = vset.pattern.permute.xlu0 8
        %1608 = vperm.xlu0 %1607, %v332
        %v1609 = vpop.permute.xlu0 %1608
        %1611 = vset.pattern.permute.xlu0 8
        %1612 = vperm.xlu0 %1611, %v333
        %v1613 = vpop.permute.xlu0 %1612
        %1615 = vset.pattern.permute.xlu0 8
        %1616 = vperm.xlu0 %1615, %v334
        %v1617 = vpop.permute.xlu0 %1616
        %1619 = vset.pattern.permute.xlu0 8
        %1620 = vperm.xlu0 %1619, %v335
        %v1621 = vpop.permute.xlu0 %1620
        %1623 = vset.pattern.permute.xlu0 8
        %1624 = vperm.xlu0 %1623, %v336
        %v1625 = vpop.permute.xlu0 %1624
        %1627 = vset.pattern.permute.xlu0 8
        %1628 = vperm.xlu0 %1627, %v337
        %v1629 = vpop.permute.xlu0 %1628
        %1631 = vset.pattern.permute.xlu0 8
        %1632 = vperm.xlu0 %1631, %v338
        %v1633 = vpop.permute.xlu0 %1632
        %v1635 = vadd.f32 %v339, %v1573
        %v1636 = vadd.f32 %v340, %v1577
        %v1637 = vadd.f32 %v341, %v1581
        %v1638 = vadd.f32 %v342, %v1585
        %v1639 = vadd.f32 %v343, %v1589
        %v1640 = vadd.f32 %v344, %v1593
        %v1641 = vadd.f32 %v345, %v1597
        %v1642 = vadd.f32 %v346, %v1601
        %v1643 = vadd.f32 %v347, %v1605
        %v1644 = vadd.f32 %v348, %v1609
        %v1645 = vadd.f32 %v349, %v1613
        %v1646 = vadd.f32 %v350, %v1617
        %v1647 = vadd.f32 %v351, %v1621
        %v1648 = vadd.f32 %v352, %v1625
        %v1649 = vadd.f32 %v353, %v1629
        %v1650 = vadd.f32 %v354, %v1633
        %1667 = vrot.lane.b32.xlu0 %v1635, 80
        %v1668 = vpop.permute.xlu0 %1667
        %1669 = vrot.lane.b32.xlu0 %v1636, 80
        %v1670 = vpop.permute.xlu0 %1669
        %1671 = vrot.lane.b32.xlu0 %v1637, 80
        %v1672 = vpop.permute.xlu0 %1671
        %1673 = vrot.lane.b32.xlu0 %v1638, 80
        %v1674 = vpop.permute.xlu0 %1673
        %1675 = vrot.lane.b32.xlu0 %v1639, 80
        %v1676 = vpop.permute.xlu0 %1675
        %1677 = vrot.lane.b32.xlu0 %v1640, 80
        %v1678 = vpop.permute.xlu0 %1677
        %1679 = vrot.lane.b32.xlu0 %v1641, 80
        %v1680 = vpop.permute.xlu0 %1679
        %1681 = vrot.lane.b32.xlu0 %v1642, 80
        %v1682 = vpop.permute.xlu0 %1681
        %1683 = vrot.lane.b32.xlu0 %v1643, 80
        %v1684 = vpop.permute.xlu0 %1683
        %1685 = vrot.lane.b32.xlu0 %v1644, 80
        %v1686 = vpop.permute.xlu0 %1685
        %1687 = vrot.lane.b32.xlu0 %v1645, 80
        %v1688 = vpop.permute.xlu0 %1687
        %1689 = vrot.lane.b32.xlu0 %v1646, 80
        %v1690 = vpop.permute.xlu0 %1689
        %1691 = vrot.lane.b32.xlu0 %v1647, 80
        %v1692 = vpop.permute.xlu0 %1691
        %1693 = vrot.lane.b32.xlu0 %v1648, 80
        %v1694 = vpop.permute.xlu0 %1693
        %1695 = vrot.lane.b32.xlu0 %v1649, 80
        %v1696 = vpop.permute.xlu0 %1695
        %1697 = vrot.lane.b32.xlu0 %v1650, 80
        %v1698 = vpop.permute.xlu0 %1697
        %v1715 = vmax.f32 %v1555, %v1668
        %v1716 = vmax.f32 %v1556, %v1670
        %v1717 = vmax.f32 %v1557, %v1672
        %v1718 = vmax.f32 %v1558, %v1674
        %v1719 = vmax.f32 %v1559, %v1676
        %v1720 = vmax.f32 %v1560, %v1678
        %v1721 = vmax.f32 %v1561, %v1680
        %v1722 = vmax.f32 %v1562, %v1682
        %v1723 = vmax.f32 %v1563, %v1684
        %v1724 = vmax.f32 %v1564, %v1686
        %v1725 = vmax.f32 %v1565, %v1688
        %v1726 = vmax.f32 %v1566, %v1690
        %v1727 = vmax.f32 %v1567, %v1692
        %v1728 = vmax.f32 %v1568, %v1694
        %v1729 = vmax.f32 %v1569, %v1696
        %v1730 = vmax.f32 %v1570, %v1698
        %v1731 = vpack.c.bf16 %v1716, %v1715
        %v1732 = vpack.c.bf16 %v1718, %v1717
        %v1733 = vpack.c.bf16 %v1720, %v1719
        %v1734 = vpack.c.bf16 %v1722, %v1721
        %v1735 = vpack.c.bf16 %v1724, %v1723
        %v1736 = vpack.c.bf16 %v1726, %v1725
        %v1737 = vpack.c.bf16 %v1728, %v1727
        %v1738 = vpack.c.bf16 %v1730, %v1729
        %v1739 = vld [vmem:[%s3] sm:$0x3]
        %1748 = vrot.lane.b32.xlu0 %v1731, 104
        %v1749 = vpop.permute.xlu0 %1748
        %1750 = vrot.lane.b32.xlu0 %v1732, 104
        %v1751 = vpop.permute.xlu0 %1750
        %1752 = vrot.lane.b32.xlu0 %v1733, 104
        %v1753 = vpop.permute.xlu0 %1752
        %1754 = vrot.lane.b32.xlu0 %v1734, 104
        %v1755 = vpop.permute.xlu0 %1754
        %1756 = vrot.lane.b32.xlu0 %v1735, 104
        %v1757 = vpop.permute.xlu0 %1756
        %1758 = vrot.lane.b32.xlu0 %v1736, 104
        %v1759 = vpop.permute.xlu0 %1758
        %1760 = vrot.lane.b32.xlu0 %v1737, 104
        %v1761 = vpop.permute.xlu0 %1760
        %1762 = vrot.lane.b32.xlu0 %v1738, 104
        %v1763 = vpop.permute.xlu0 %1762
        %vm1764 = vcmask 31744
        %v1766 = vsel %vm1764, %v1749, 0
        %v1769 = vsel %vm1764, %v1751, 0
        %v1772 = vsel %vm1764, %v1753, 0
        %v1775 = vsel %vm1764, %v1755, 0
        %v1778 = vsel %vm1764, %v1757, 0
        %v1781 = vsel %vm1764, %v1759, 0
        %v1784 = vsel %vm1764, %v1761, 0
        %v1787 = vsel %vm1764, %v1763, 0
        %vm1789 = vcmask 1041408
        %v1791 = vsel %vm1789, %v1739, 0
        %1793 = vmatprep.subr.bf16.mxu0 0
        %1794 = vmatpush1.bf16.msra.mxu0 0
        %1795 = vmatprep.subr.bf16.mxu0 0
        %1796 = vmatpush1.bf16.msra.mxu0 0
        %1797 = vmatprep.subr.bf16.mxu0 0
        %1798 = vmatpush1.bf16.msra.mxu0 0
        %1799 = vmatprep.subr.bf16.mxu0 0
        %1800 = vmatpush1.bf16.msra.mxu0 0
        %1801 = vmatprep.subr.bf16.mxu0 0
        %1802 = vmatpush1.bf16.msra.mxu0 0
        %1803 = vmatprep.subr.bf16.mxu0 0
        %1804 = vmatpush1.bf16.msra.mxu0 0
        %1805 = vmatprep.subr.bf16.mxu0 0
        %1806 = vmatpush1.bf16.msra.mxu0 0
        %1807 = vmatprep.subr.bf16.mxu0 0
        %1808 = vmatpush1.bf16.msra.mxu0 %v1791
        %1809 = vmatprep.subr.bf16.mxu0 0
        %1810 = vmatpush2.bf16.msra.mxu0 0
        %1811 = vmatprep.subr.bf16.mxu0 0
        %1812 = vmatpush2.bf16.msra.mxu0 0
        %1813 = vmatprep.subr.bf16.mxu0 0
        %1814 = vmatpush2.bf16.msra.mxu0 0
        %1815 = vmatprep.subr.bf16.mxu0 0
        %1816 = vmatpush2.bf16.msra.mxu0 0
        %1817 = vmatprep.subr.bf16.mxu0 0
        %1818 = vmatpush2.bf16.msra.mxu0 0
        %1819 = vmatprep.subr.bf16.mxu0 0
        %1820 = vmatpush2.bf16.msra.mxu0 0
        %1821 = vmatprep.subr.bf16.mxu0 0
        %1822 = vmatpush2.bf16.msra.mxu0 0
        %1823 = vmatprep.subr.bf16.mxu0 0
        %1824 = vmatpush2.bf16.msra.mxu0 0
        %1825 = vmatprep.mubr.bf16.mxu0 0
        %1826 = vmatmul.mubr.bf16.gmra.mxu0 %v1766
        %v1827 = vpop.f32.mrf.mxu0
        %v1828 = vadd.f32 0.0, %v1827
        %v1829 = vpop.f32.mrf.mxu0
        %v1830 = vpop.f32.mrf.mxu0
        %v1831 = vadd.f32 0.0, %v1830
        %v1832 = vpop.f32.mrf.mxu0
        %1833 = vmatprep.mubr.bf16.mxu0 0
        %1834 = vmatmul.mubr.bf16.gmra.mxu0 %v1769
        %v1835 = vpop.f32.mrf.mxu0
        %v1836 = vadd.f32 0.0, %v1835
        %v1837 = vpop.f32.mrf.mxu0
        %v1838 = vpop.f32.mrf.mxu0
        %v1839 = vadd.f32 0.0, %v1838
        %v1840 = vpop.f32.mrf.mxu0
        %1841 = vmatprep.mubr.bf16.mxu0 0
        %1842 = vmatmul.mubr.bf16.gmra.mxu0 %v1772
        %v1843 = vpop.f32.mrf.mxu0
        %v1844 = vadd.f32 0.0, %v1843
        %v1845 = vpop.f32.mrf.mxu0
        %v1846 = vpop.f32.mrf.mxu0
        %v1847 = vadd.f32 0.0, %v1846
        %v1848 = vpop.f32.mrf.mxu0
        %1849 = vmatprep.mubr.bf16.mxu0 0
        %1850 = vmatmul.mubr.bf16.gmra.mxu0 %v1775
        %v1851 = vpop.f32.mrf.mxu0
        %v1852 = vadd.f32 0.0, %v1851
        %v1853 = vpop.f32.mrf.mxu0
        %v1854 = vpop.f32.mrf.mxu0
        %v1855 = vadd.f32 0.0, %v1854
        %v1856 = vpop.f32.mrf.mxu0
        %1857 = vmatprep.mubr.bf16.mxu0 0
        %1858 = vmatmul.mubr.bf16.gmra.mxu0 %v1778
        %v1859 = vpop.f32.mrf.mxu0
        %v1860 = vadd.f32 0.0, %v1859
        %v1861 = vpop.f32.mrf.mxu0
        %v1862 = vpop.f32.mrf.mxu0
        %v1863 = vadd.f32 0.0, %v1862
        %v1864 = vpop.f32.mrf.mxu0
        %1865 = vmatprep.mubr.bf16.mxu0 0
        %1866 = vmatmul.mubr.bf16.gmra.mxu0 %v1781
        %v1867 = vpop.f32.mrf.mxu0
        %v1868 = vadd.f32 0.0, %v1867
        %v1869 = vpop.f32.mrf.mxu0
        %v1870 = vpop.f32.mrf.mxu0
        %v1871 = vadd.f32 0.0, %v1870
        %v1872 = vpop.f32.mrf.mxu0
        %1873 = vmatprep.mubr.bf16.mxu0 0
        %1874 = vmatmul.mubr.bf16.gmra.mxu0 %v1784
        %v1875 = vpop.f32.mrf.mxu0
        %v1876 = vadd.f32 0.0, %v1875
        %v1877 = vpop.f32.mrf.mxu0
        %v1878 = vpop.f32.mrf.mxu0
        %v1879 = vadd.f32 0.0, %v1878
        %v1880 = vpop.f32.mrf.mxu0
        %1881 = vmatprep.mubr.bf16.mxu0 0
        %1882 = vmatmul.mubr.bf16.gmra.mxu0 %v1787
        %v1883 = vpop.f32.mrf.mxu0
        %v1884 = vadd.f32 0.0, %v1883
        %v1885 = vpop.f32.mrf.mxu0
        %v1886 = vpop.f32.mrf.mxu0
        %v1887 = vadd.f32 0.0, %v1886
        %v1888 = vpop.f32.mrf.mxu0
        %1889 = vdwg.mxu0
        %v1906 = vunpack.c.l.b16 %v291
        %v1907 = vunpack.c.l.b16 %v292
        %v1908 = vunpack.c.l.b16 %v293
        %v1909 = vunpack.c.l.b16 %v294
        %v1910 = vunpack.c.l.b16 %v295
        %v1911 = vunpack.c.l.b16 %v296
        %v1912 = vunpack.c.l.b16 %v297
        %v1913 = vunpack.c.l.b16 %v298
        %v1914 = vunpack.c.l.b16 %v299
        %v1915 = vunpack.c.l.b16 %v300
        %v1916 = vunpack.c.l.b16 %v301
        %v1917 = vunpack.c.l.b16 %v302
        %v1918 = vunpack.c.l.b16 %v303
        %v1919 = vunpack.c.l.b16 %v304
        %v1920 = vunpack.c.l.b16 %v305
        %v1921 = vunpack.c.l.b16 %v306
        %v1922 = vpack.c.b16 %v1907, %v1906
        %v1923 = vpack.c.b16 %v1909, %v1908
        %v1924 = vpack.c.b16 %v1911, %v1910
        %v1925 = vpack.c.b16 %v1913, %v1912
        %v1926 = vpack.c.b16 %v1915, %v1914
        %v1927 = vpack.c.b16 %v1917, %v1916
        %v1928 = vpack.c.b16 %v1919, %v1918
        %v1929 = vpack.c.b16 %v1921, %v1920
        %v1954 = vunpack.c.l.b16 %v307
        %v1955 = vunpack.c.l.b16 %v308
        %v1956 = vunpack.c.l.b16 %v309
        %v1957 = vunpack.c.l.b16 %v310
        %v1958 = vunpack.c.l.b16 %v311
        %v1959 = vunpack.c.l.b16 %v312
        %v1960 = vunpack.c.l.b16 %v313
        %v1961 = vunpack.c.l.b16 %v314
        %v1962 = vunpack.c.l.b16 %v315
        %v1963 = vunpack.c.l.b16 %v316
        %v1964 = vunpack.c.l.b16 %v317
        %v1965 = vunpack.c.l.b16 %v318
        %v1966 = vunpack.c.l.b16 %v319
        %v1967 = vunpack.c.l.b16 %v320
        %v1968 = vunpack.c.l.b16 %v321
        %v1969 = vunpack.c.l.b16 %v322
        %v1970 = vpack.c.b16 %v1955, %v1954
        %v1971 = vpack.c.b16 %v1957, %v1956
        %v1972 = vpack.c.b16 %v1959, %v1958
        %v1973 = vpack.c.b16 %v1961, %v1960
        %v1974 = vpack.c.b16 %v1963, %v1962
        %v1975 = vpack.c.b16 %v1965, %v1964
        %v1976 = vpack.c.b16 %v1967, %v1966
        %v1977 = vpack.c.b16 %v1969, %v1968
        %1986 = vmatprep.subr.bf16.mxu0 0
        %1987 = vmatpush1.bf16.msra.mxu0 %v1977
        %1988 = vmatprep.subr.bf16.mxu0 0
        %1989 = vmatpush1.bf16.msra.mxu0 %v1976
        %1990 = vmatprep.subr.bf16.mxu0 0
        %1991 = vmatpush1.bf16.msra.mxu0 %v1975
        %1992 = vmatprep.subr.bf16.mxu0 0
        %1993 = vmatpush1.bf16.msra.mxu0 %v1974
        %1994 = vmatprep.subr.bf16.mxu0 0
        %1995 = vmatpush1.bf16.msra.mxu0 %v1973
        %1996 = vmatprep.subr.bf16.mxu0 0
        %1997 = vmatpush1.bf16.msra.mxu0 %v1972
        %1998 = vmatprep.subr.bf16.mxu0 0
        %1999 = vmatpush1.bf16.msra.mxu0 %v1971
        %2000 = vmatprep.subr.bf16.mxu0 0
        %2001 = vmatpush1.bf16.msra.mxu0 %v1970
        %2002 = vmatprep.subr.bf16.mxu0 0
        %2003 = vmatpush2.bf16.msra.mxu0 0
        %2004 = vmatprep.subr.bf16.mxu0 0
        %2005 = vmatpush2.bf16.msra.mxu0 0
        %2006 = vmatprep.subr.bf16.mxu0 0
        %2007 = vmatpush2.bf16.msra.mxu0 0
        %2008 = vmatprep.subr.bf16.mxu0 0
        %2009 = vmatpush2.bf16.msra.mxu0 0
        %2010 = vmatprep.subr.bf16.mxu0 0
        %2011 = vmatpush2.bf16.msra.mxu0 0
        %2012 = vmatprep.subr.bf16.mxu0 0
        %2013 = vmatpush2.bf16.msra.mxu0 0
        %2014 = vmatprep.subr.bf16.mxu0 0
        %2015 = vmatpush2.bf16.msra.mxu0 0
        %2016 = vmatprep.subr.bf16.mxu0 0
        %2017 = vmatpush2.bf16.msra.mxu0 0
        %2018 = vmatprep.mubr.bf16.mxu0 0
        %2019 = vmatmul.mubr.bf16.gmra.mxu0 %v1922
        %v2020 = vpop.f32.mrf.mxu0
        %v2021 = vadd.f32 %v1828, %v2020
        %v2022 = vpop.f32.mrf.mxu0
        %v2023 = vpop.f32.mrf.mxu0
        %v2024 = vadd.f32 %v1831, %v2023
        %v2025 = vpop.f32.mrf.mxu0
        %2026 = vmatprep.mubr.bf16.mxu0 0
        %2027 = vmatmul.mubr.bf16.gmra.mxu0 %v1923
        %v2028 = vpop.f32.mrf.mxu0
        %v2029 = vadd.f32 %v1836, %v2028
        %v2030 = vpop.f32.mrf.mxu0
        %v2031 = vpop.f32.mrf.mxu0
        %v2032 = vadd.f32 %v1839, %v2031
        %v2033 = vpop.f32.mrf.mxu0
        %2034 = vmatprep.mubr.bf16.mxu0 0
        %2035 = vmatmul.mubr.bf16.gmra.mxu0 %v1924
        %v2036 = vpop.f32.mrf.mxu0
        %v2037 = vadd.f32 %v1844, %v2036
        %v2038 = vpop.f32.mrf.mxu0
        %v2039 = vpop.f32.mrf.mxu0
        %v2040 = vadd.f32 %v1847, %v2039
        %v2041 = vpop.f32.mrf.mxu0
        %2042 = vmatprep.mubr.bf16.mxu0 0
        %2043 = vmatmul.mubr.bf16.gmra.mxu0 %v1925
        %v2044 = vpop.f32.mrf.mxu0
        %v2045 = vadd.f32 %v1852, %v2044
        %v2046 = vpop.f32.mrf.mxu0
        %v2047 = vpop.f32.mrf.mxu0
        %v2048 = vadd.f32 %v1855, %v2047
        %v2049 = vpop.f32.mrf.mxu0
        %2050 = vmatprep.mubr.bf16.mxu0 0
        %2051 = vmatmul.mubr.bf16.gmra.mxu0 %v1926
        %v2052 = vpop.f32.mrf.mxu0
        %v2053 = vadd.f32 %v1860, %v2052
        %v2054 = vpop.f32.mrf.mxu0
        %v2055 = vpop.f32.mrf.mxu0
        %v2056 = vadd.f32 %v1863, %v2055
        %v2057 = vpop.f32.mrf.mxu0
        %2058 = vmatprep.mubr.bf16.mxu0 0
        %2059 = vmatmul.mubr.bf16.gmra.mxu0 %v1927
        %v2060 = vpop.f32.mrf.mxu0
        %v2061 = vadd.f32 %v1868, %v2060
        %v2062 = vpop.f32.mrf.mxu0
        %v2063 = vpop.f32.mrf.mxu0
        %v2064 = vadd.f32 %v1871, %v2063
        %v2065 = vpop.f32.mrf.mxu0
        %2066 = vmatprep.mubr.bf16.mxu0 0
        %2067 = vmatmul.mubr.bf16.gmra.mxu0 %v1928
        %v2068 = vpop.f32.mrf.mxu0
        %v2069 = vadd.f32 %v1876, %v2068
        %v2070 = vpop.f32.mrf.mxu0
        %v2071 = vpop.f32.mrf.mxu0
        %v2072 = vadd.f32 %v1879, %v2071
        %v2073 = vpop.f32.mrf.mxu0
        %2074 = vmatprep.mubr.bf16.mxu0 0
        %2075 = vmatmul.mubr.bf16.gmra.mxu0 %v1929
        %v2076 = vpop.f32.mrf.mxu0
        %v2077 = vadd.f32 %v1884, %v2076
        %v2078 = vpop.f32.mrf.mxu0
        %v2079 = vpop.f32.mrf.mxu0
        %v2080 = vadd.f32 %v1887, %v2079
        %v2081 = vpop.f32.mrf.mxu0
        %2082 = vdwg.mxu0
        %p2083 = scmp.eq.s32.totalorder %s24, 0
        %p2084 = scmp.eq.s32.totalorder %s25, 0
        %p2085 = pnand %p2083, %p2084
        %p2086 = pneg %p2085
        // Predicated region
        $region45: #{inception_block.1} parent=43 // pred_check
          _
        $region46: #{inception_block.1} parent=43 // pred_check_branch
          %2088 = sbr.rel (%p2085) target = $region48
        $region47: #{inception_block.1} parent=43 // pred_region
          %2089 = vst [vmem:[#allocation2] sm:$0x3] 0.0
        $region48: #{inception_block.1} parent=43 // pred_fallthru
          _
        // Predicated region
        $region49: #{inception_block.1} parent=43 // pred_check
          %p2090 = pneg %p2083
        $region50: #{inception_block.1} parent=43 // pred_check_branch
          %2092 = sbr.rel (%p2090) target = $region52
        $region51: #{inception_block.1} parent=43 // pred_region
          %v2093 = vld [vmem:[#allocation2] sm:$0x1]
          %v2094 = vadd.f32 %v2021, %v2024
          %v2095 = vadd.f32 %v2094, %v2029
          %v2096 = vadd.f32 %v2095, %v2032
          %v2097 = vadd.f32 %v2096, %v2037
          %v2098 = vadd.f32 %v2097, %v2040
          %v2099 = vadd.f32 %v2098, %v2045
          %v2100 = vadd.f32 %v2099, %v2048
          %v2101 = vadd.f32 %v2100, %v2053
          %v2102 = vadd.f32 %v2101, %v2056
          %v2103 = vadd.f32 %v2102, %v2061
          %v2104 = vadd.f32 %v2103, %v2064
          %v2105 = vadd.f32 %v2104, %v2069
          %v2106 = vadd.f32 %v2105, %v2072
          %v2107 = vadd.f32 %v2106, %v2077
          %v2108 = vadd.f32 %v2107, %v2080
          %v2109 = vrot.slane %v2108, 4
          %v2110 = vadd.f32 %v2108, %v2109
          %v2111 = vrot.slane %v2110, 2
          %v2112 = vadd.f32 %v2110, %v2111
          %v2113 = vrot.slane %v2112, 1
          %v2114 = vadd.f32 %v2112, %v2113
          %v2115 = vadd.f32 %v2093, %v2114
          %2116 = vst [vmem:[#allocation2] sm:$0x1] %v2115
          %v2117 = vld [vmem:[#allocation2 + $0x1] sm:$0x1]
          %v2118 = vmul.f32 %v2021, %v2021
          %v2119 = vmul.f32 %v2024, %v2024
          %v2120 = vmul.f32 %v2029, %v2029
          %v2121 = vmul.f32 %v2032, %v2032
          %v2122 = vmul.f32 %v2037, %v2037
          %v2123 = vmul.f32 %v2040, %v2040
          %v2124 = vmul.f32 %v2045, %v2045
          %v2125 = vmul.f32 %v2048, %v2048
          %v2126 = vmul.f32 %v2053, %v2053
          %v2127 = vmul.f32 %v2056, %v2056
          %v2128 = vmul.f32 %v2061, %v2061
          %v2129 = vmul.f32 %v2064, %v2064
          %v2130 = vmul.f32 %v2069, %v2069
          %v2131 = vmul.f32 %v2072, %v2072
          %v2132 = vmul.f32 %v2077, %v2077
          %v2133 = vmul.f32 %v2080, %v2080
          %v2134 = vadd.f32 %v2118, %v2119
          %v2135 = vadd.f32 %v2134, %v2120
          %v2136 = vadd.f32 %v2135, %v2121
          %v2137 = vadd.f32 %v2136, %v2122
          %v2138 = vadd.f32 %v2137, %v2123
          %v2139 = vadd.f32 %v2138, %v2124
          %v2140 = vadd.f32 %v2139, %v2125
          %v2141 = vadd.f32 %v2140, %v2126
          %v2142 = vadd.f32 %v2141, %v2127
          %v2143 = vadd.f32 %v2142, %v2128
          %v2144 = vadd.f32 %v2143, %v2129
          %v2145 = vadd.f32 %v2144, %v2130
          %v2146 = vadd.f32 %v2145, %v2131
          %v2147 = vadd.f32 %v2146, %v2132
          %v2148 = vadd.f32 %v2147, %v2133
          %v2149 = vrot.slane %v2148, 4
          %v2150 = vadd.f32 %v2148, %v2149
          %v2151 = vrot.slane %v2150, 2
          %v2152 = vadd.f32 %v2150, %v2151
          %v2153 = vrot.slane %v2152, 1
          %v2154 = vadd.f32 %v2152, %v2153
          %v2155 = vadd.f32 %v2117, %v2154
          %2156 = vst [vmem:[#allocation2 + $0x1] sm:$0x1] %v2155
        $region52: #{inception_block.1} parent=43 // pred_fallthru
          _
        %p2157 = scmp.eq.s32.totalorder %s24, 1
        // Predicated region
        $region53: #{inception_block.1} parent=43 // pred_check
          %p2158 = pneg %p2157
        $region54: #{inception_block.1} parent=43 // pred_check_branch
          %2160 = sbr.rel (%p2158) target = $region56
        $region55: #{inception_block.1} parent=43 // pred_region
          %v2161 = vld [vmem:[#allocation2] sm:$0x1]
          %v2162 = vmul.f32 %v2161, 0.001953125
          %v2163 = vld [vmem:[#allocation2 + $0x1] sm:$0x1]
          %v2164 = vmul.f32 %v2163, 0.001953125
          %v2165 = vmul.f32 %v2162, %v2162
          %v2166 = vsub.f32 %v2164, %v2165
          %v2167 = vlaneseq
          %v2168 = vshrl.u32 %v2167, 7
          %v2169 = vsub.s32 0, %v2168
          %v2170 = vrot.slane %v2162, %v2169
          %v2171 = vsub.f32 %v2021, %v2170
          %v2172 = vsub.f32 %v2024, %v2170
          %v2173 = vsub.f32 %v2029, %v2170
          %v2174 = vsub.f32 %v2032, %v2170
          %v2175 = vsub.f32 %v2037, %v2170
          %v2176 = vsub.f32 %v2040, %v2170
          %v2177 = vsub.f32 %v2045, %v2170
          %v2178 = vsub.f32 %v2048, %v2170
          %v2179 = vsub.f32 %v2053, %v2170
          %v2180 = vsub.f32 %v2056, %v2170
          %v2181 = vsub.f32 %v2061, %v2170
          %v2182 = vsub.f32 %v2064, %v2170
          %v2183 = vsub.f32 %v2069, %v2170
          %v2184 = vsub.f32 %v2072, %v2170
          %v2185 = vsub.f32 %v2077, %v2170
          %v2186 = vsub.f32 %v2080, %v2170
          %v2187 = vadd.f32 %v2166, 0.001
          %v2188 = vrsqrt.pop %v2187
          %v2189 = vlaneseq
          %v2190 = vshrl.u32 %v2189, 7
          %v2191 = vsub.s32 0, %v2190
          %v2192 = vrot.slane %v2188, %v2191
          %v2193 = vmul.f32 %v2171, %v2192
          %v2194 = vmul.f32 %v2172, %v2192
          %v2195 = vmul.f32 %v2173, %v2192
          %v2196 = vmul.f32 %v2174, %v2192
          %v2197 = vmul.f32 %v2175, %v2192
          %v2198 = vmul.f32 %v2176, %v2192
          %v2199 = vmul.f32 %v2177, %v2192
          %v2200 = vmul.f32 %v2178, %v2192
          %v2201 = vmul.f32 %v2179, %v2192
          %v2202 = vmul.f32 %v2180, %v2192
          %v2203 = vmul.f32 %v2181, %v2192
          %v2204 = vmul.f32 %v2182, %v2192
          %v2205 = vmul.f32 %v2183, %v2192
          %v2206 = vmul.f32 %v2184, %v2192
          %v2207 = vmul.f32 %v2185, %v2192
          %v2208 = vmul.f32 %v2186, %v2192
          %v2209 = vld [vmem:[%s4] sm:$0x1]
          %v2211 = vlaneseq
          %v2212 = vshrl.u32 %v2211, 7
          %v2213 = vsub.s32 0, %v2212
          %v2214 = vrot.slane %v2209, %v2213
          %v2216 = vmul.f32 %v2193, %v2214
          %v2217 = vmul.f32 %v2194, %v2214
          %v2218 = vmul.f32 %v2195, %v2214
          %v2219 = vmul.f32 %v2196, %v2214
          %v2220 = vmul.f32 %v2197, %v2214
          %v2221 = vmul.f32 %v2198, %v2214
          %v2222 = vmul.f32 %v2199, %v2214
          %v2223 = vmul.f32 %v2200, %v2214
          %v2224 = vmul.f32 %v2201, %v2214
          %v2225 = vmul.f32 %v2202, %v2214
          %v2226 = vmul.f32 %v2203, %v2214
          %v2227 = vmul.f32 %v2204, %v2214
          %v2228 = vmul.f32 %v2205, %v2214
          %v2229 = vmul.f32 %v2206, %v2214
          %v2230 = vmul.f32 %v2207, %v2214
          %v2231 = vmul.f32 %v2208, %v2214
          %v2232 = vld [vmem:[%s5] sm:$0x1]
          %v2234 = vlaneseq
          %v2235 = vshrl.u32 %v2234, 7
          %v2236 = vsub.s32 0, %v2235
          %v2237 = vrot.slane %v2232, %v2236
          %v2239 = vadd.f32 %v2216, %v2237
          %v2240 = vadd.f32 %v2217, %v2237
          %v2241 = vadd.f32 %v2218, %v2237
          %v2242 = vadd.f32 %v2219, %v2237
          %v2243 = vadd.f32 %v2220, %v2237
          %v2244 = vadd.f32 %v2221, %v2237
          %v2245 = vadd.f32 %v2222, %v2237
          %v2246 = vadd.f32 %v2223, %v2237
          %v2247 = vadd.f32 %v2224, %v2237
          %v2248 = vadd.f32 %v2225, %v2237
          %v2249 = vadd.f32 %v2226, %v2237
          %v2250 = vadd.f32 %v2227, %v2237
          %v2251 = vadd.f32 %v2228, %v2237
          %v2252 = vadd.f32 %v2229, %v2237
          %v2253 = vadd.f32 %v2230, %v2237
          %v2254 = vadd.f32 %v2231, %v2237
          %vm2255 = vcmp.gt.f32.partialorder %v2239, 0.0
          %vm2256 = vcmp.gt.f32.partialorder %v2240, 0.0
          %vm2257 = vcmp.gt.f32.partialorder %v2241, 0.0
          %vm2258 = vcmp.gt.f32.partialorder %v2242, 0.0
          %vm2259 = vcmp.gt.f32.partialorder %v2243, 0.0
          %vm2260 = vcmp.gt.f32.partialorder %v2244, 0.0
          %vm2261 = vcmp.gt.f32.partialorder %v2245, 0.0
          %vm2262 = vcmp.gt.f32.partialorder %v2246, 0.0
          %vm2263 = vcmp.gt.f32.partialorder %v2247, 0.0
          %vm2264 = vcmp.gt.f32.partialorder %v2248, 0.0
          %vm2265 = vcmp.gt.f32.partialorder %v2249, 0.0
          %vm2266 = vcmp.gt.f32.partialorder %v2250, 0.0
          %vm2267 = vcmp.gt.f32.partialorder %v2251, 0.0
          %vm2268 = vcmp.gt.f32.partialorder %v2252, 0.0
          %vm2269 = vcmp.gt.f32.partialorder %v2253, 0.0
          %vm2270 = vcmp.gt.f32.partialorder %v2254, 0.0
          %v2271 = vmul.f32 %v2239, 0.1
          %v2272 = vmul.f32 %v2240, 0.1
          %v2273 = vmul.f32 %v2241, 0.1
          %v2274 = vmul.f32 %v2242, 0.1
          %v2275 = vmul.f32 %v2243, 0.1
          %v2276 = vmul.f32 %v2244, 0.1
          %v2277 = vmul.f32 %v2245, 0.1
          %v2278 = vmul.f32 %v2246, 0.1
          %v2279 = vmul.f32 %v2247, 0.1
          %v2280 = vmul.f32 %v2248, 0.1
          %v2281 = vmul.f32 %v2249, 0.1
          %v2282 = vmul.f32 %v2250, 0.1
          %v2283 = vmul.f32 %v2251, 0.1
          %v2284 = vmul.f32 %v2252, 0.1
          %v2285 = vmul.f32 %v2253, 0.1
          %v2286 = vmul.f32 %v2254, 0.1
          %v2287 = vsel %vm2255, %v2239, %v2271
          %v2288 = vsel %vm2256, %v2240, %v2272
          %v2289 = vsel %vm2257, %v2241, %v2273
          %v2290 = vsel %vm2258, %v2242, %v2274
          %v2291 = vsel %vm2259, %v2243, %v2275
          %v2292 = vsel %vm2260, %v2244, %v2276
          %v2293 = vsel %vm2261, %v2245, %v2277
          %v2294 = vsel %vm2262, %v2246, %v2278
          %v2295 = vsel %vm2263, %v2247, %v2279
          %v2296 = vsel %vm2264, %v2248, %v2280
          %v2297 = vsel %vm2265, %v2249, %v2281
          %v2298 = vsel %vm2266, %v2250, %v2282
          %v2299 = vsel %vm2267, %v2251, %v2283
          %v2300 = vsel %vm2268, %v2252, %v2284
          %v2301 = vsel %vm2269, %v2253, %v2285
          %v2302 = vsel %vm2270, %v2254, %v2286
          %2303 = vst [vmem:[%s275] sm:$0xff] %v2287
          %2304 = vst [vmem:[%s275 + $0x8] sm:$0xff] %v2288
          %2305 = vst [vmem:[%s275 + $0x10] sm:$0xff] %v2289
          %2306 = vst [vmem:[%s275 + $0x18] sm:$0xff] %v2290
          %2307 = vst [vmem:[%s275 + $0x20] sm:$0xff] %v2291
          %2308 = vst [vmem:[%s275 + $0x28] sm:$0xff] %v2292
          %2309 = vst [vmem:[%s275 + $0x30] sm:$0xff] %v2293
          %2310 = vst [vmem:[%s275 + $0x38] sm:$0xff] %v2294
          %2311 = vst [vmem:[%s275 + $0x40] sm:$0xff] %v2295
          %2312 = vst [vmem:[%s275 + $0x48] sm:$0xff] %v2296
          %2313 = vst [vmem:[%s275 + $0x50] sm:$0xff] %v2297
          %2314 = vst [vmem:[%s275 + $0x58] sm:$0xff] %v2298
          %2315 = vst [vmem:[%s275 + $0x60] sm:$0xff] %v2299
          %2316 = vst [vmem:[%s275 + $0x68] sm:$0xff] %v2300
          %2317 = vst [vmem:[%s275 + $0x70] sm:$0xff] %v2301
          %2318 = vst [vmem:[%s275 + $0x78] sm:$0xff] %v2302
        $region56: #{inception_block.1} parent=43 // pred_fallthru
          _
        %s2319 = sand.u32 %s178, 1
        %s2320 = scalar_lea.sflag [#allocation4], %s2319
        %s2321 = sand.u32 %s178, 1
        %s2322 = smul.addr %s2321, 128
        %s2323 = scalar_lea.vmem [#allocation3], %s2322
        // Predicated region
        $region57: #{inception_block.1} parent=43 // pred_check
          %p2324 = pneg %p188
        $region58: #{inception_block.1} parent=43 // pred_check_branch
          %2326 = sbr.rel (%p2324) target = $region60
        $region59: #{inception_block.1} parent=43 // pred_region
          %s2327 = smul.u32 %s25, %s24
          %s2328 = smul.u32 16, %s2327
          %s2330 = ssub.s32 2048, 2048
          %2331 = vsyncadd %s2320, %s2330
          %s2332 = smul.addr %s2328, 128
          %s2333 = scalar_lea.hbm %s6, %s2332
          %s2334 = sshll.u32 %s2323, 4
          %s2335 = int_to_ptr.vmem [resolvable:$true] %s2334
          %2340 = dma.vmem_to_hbm [thread:$0]  %s2335, 2048, %s2333, %s2320, 128, 128, 8
        $region60: #{inception_block.1} parent=43 // pred_fallthru
          _
      $region44: #{inception_block.1} parent=5 // pred_fallthru
        _
      %p2341 = scmp.le.s32.totalorder 2, %s15
      // Predicated region
      $region61: #{inception_block.1} parent=5 // pred_check
        %p2342 = pneg %p2341
      $region62: #{inception_block.1} parent=5 // pred_check_branch
        %2344 = sbr.rel (%p2342) target = $region64
      $region63: #{inception_block.1} parent=5 // pred_region
        %s2345 = ssub.s32 %s15, 2
        // Predicated region
        $region65: #{inception_block.1} parent=63 // pred_check
          %p2346 = pneg %p194
        $region66: #{inception_block.1} parent=63 // pred_check_branch
          %2348 = sbr.rel (%p2346) target = $region68
        $region67: #{inception_block.1} parent=63 // pred_region
          %s2349 = sand.u32 %s179, 1
          %s2350 = scalar_lea.sflag [#allocation4], %s2349
          %s2351 = sand.u32 %s179, 1
          %s2352 = smul.addr %s2351, 128
          %s2353 = scalar_lea.vmem [#allocation3], %s2352
          %2354 = dma.done %s2350, 2048
        $region68: #{inception_block.1} parent=63 // pred_fallthru
          _
      $region64: #{inception_block.1} parent=5 // pred_fallthru
        _
    $region6: #{inception_block.1} parent=1 // loop_footer
      %s19 = sadd.s32 1, %s15
    $region7: #{inception_block.1} parent=1 // loop_footer_branch
      %14 = sbr.rel target = $region3
    $region8: #{inception_block.1} parent=1 // loop_exit
      _
    %2355 = vsyncpa [#allocation4], 1
    %s2356 = scalar_lea.sflag [#allocation4], 1
    %2357 = vsyncpa %s2356, 1

</llo_original>
